<compile_context>
chip_gen: v6e
topology: v6e:2x2x1
jax: 0.10.0
libtpu: 0.0.40
codegen_flags: <defaults>
</compile_context>

<pallas_src>
import jax
import jax.numpy as jnp
from jax import lax
from jax.experimental import pallas as pl
from jax.experimental.pallas import tpu as pltpu


# ---------------------------------------------------------------------------
# Kernel bodies
# ---------------------------------------------------------------------------

def _channel_matmul_kernel(w_ref, x_ref, o_ref):
    # w: (Cout, K), x: (K, M) -> o: (Cout, M)   (1x1 conv / im2col conv)
    o_ref[...] = jnp.dot(
        w_ref[...], x_ref[...], preferred_element_type=jnp.float32
    ).astype(o_ref.dtype)


def _qkv_kernel(wq_ref, wk_ref, wv_ref, x_ref, q_ref, k_ref, v_ref):
    # Fused 1x1 projections: a single read of x feeds three MXU matmuls.
    x = x_ref[...]
    q_ref[...] = jnp.dot(wq_ref[...], x,
                         preferred_element_type=jnp.float32).astype(q_ref.dtype)
    k_ref[...] = jnp.dot(wk_ref[...], x,
                         preferred_element_type=jnp.float32).astype(k_ref.dtype)
    v_ref[...] = jnp.dot(wv_ref[...], x,
                         preferred_element_type=jnp.float32).astype(v_ref.dtype)


def _axial_attn_kernel(q_ref, k_ref, v_ref, x_ref, o_ref):
    # q, k: (Mq, A)   v, x, o: (Mv, A)   (v already scaled by gamma on host)
    # energy[a1, a2] = sum_m q[m, a1] * k[m, a2]          == bmm(q^T, k)
    energy = lax.dot_general(
        q_ref[...], k_ref[...],
        dimension_numbers=(((0,), (0,)), ((), ())),
        preferred_element_type=jnp.float32)
    attn = 1.0 / (1.0 + jnp.exp(-energy))                 # sigmoid
    # out[m, a1] = sum_a2 v[m, a2] * attn[a1, a2]         == bmm(v, attn^T)
    out = lax.dot_general(
        v_ref[...], attn,
        dimension_numbers=(((1,), (1,)), ((), ())),
        preferred_element_type=jnp.float32)
    # Residual:  gamma * bmm(...)  + x   (gamma folded into v)
    o_ref[...] = (out + x_ref[...].astype(jnp.float32)).astype(o_ref.dtype)


# ---------------------------------------------------------------------------
# Pallas wrappers
# ---------------------------------------------------------------------------

def _channel_matmul(w, x_bkm):
    """w: (Cout, K), x: (B, K, M) -> (B, Cout, M); batch axis is the grid."""
    b, k, m = x_bkm.shape
    cout = w.shape[0]
    return pl.pallas_call(
        _channel_matmul_kernel,
        out_shape=jax.ShapeDtypeStruct((b, cout, m), x_bkm.dtype),
        grid=(b,),
        in_specs=[
            pl.BlockSpec((cout, k), lambda i: (0, 0)),
            pl.BlockSpec((None, k, m), lambda i: (i, 0, 0)),
        ],
        out_specs=pl.BlockSpec((None, cout, m), lambda i: (i, 0, 0)),
        compiler_params=pltpu.CompilerParams(dimension_semantics=("parallel",)),
    )(w, x_bkm)


def conv1x1(x_nchw, w):
    """Pointwise conv, no bias. w: (Cout, Cin)."""
    b, cin, h, wd = x_nchw.shape
    y = _channel_matmul(w, x_nchw.reshape(b, cin, h * wd))   # free reshape
    return y.reshape(b, w.shape[0], h, wd)


def conv3x3(x_nchw, w):
    """3x3 conv, padding 1, no bias. w: (Cout, Cin, 3, 3).

    Patch extraction (zero-pad + 9 shifted slices) is host-side glue; the
    contraction runs in the Pallas channel-matmul kernel on the MXU.
    """
    b, cin, h, wd = x_nchw.shape
    cout = w.shape[0]
    xp = jnp.pad(x_nchw, ((0, 0), (0, 0), (1, 1), (1, 1)))
    pats = jnp.stack(
        [xp[:, :, dh:dh + h, dw:dw + wd] for dh in range(3) for dw in range(3)],
        axis=2)                                   # (B, Cin, 9, H, W)
    pats = pats.reshape(b, cin * 9, h * wd)       # matches (Cout, Cin*9) order
    y = _channel_matmul(w.reshape(cout, cin * 9), pats)
    return y.reshape(b, cout, h, wd)


def self_attn(x_nchw, wq, wk, wv, gamma, mode):
    """Axial self-attention ('h' or 'w'), faithful to the torch .view trick."""
    b, c, h, wd = x_nchw.shape
    hw = h * wd
    cq = wq.shape[0]
    axis = 1
    if 'h' in mode:
        axis *= h
    if 'w' in mode:
        axis *= wd

    x_cm = x_nchw.reshape(b, c, hw)               # free contiguous reshape

    # gamma * (Wv x) @ att^T  ==  ((gamma*Wv) x) @ att^T : fold gamma on host.
    wv_g = gamma * wv

    # Fused q/k/v 1x1 projections: one pallas_call, one read of x per sample.
    q, k, v = pl.pallas_call(
        _qkv_kernel,
        out_shape=(jax.ShapeDtypeStruct((b, cq, hw), x_nchw.dtype),
                   jax.ShapeDtypeStruct((b, cq, hw), x_nchw.dtype),
                   jax.ShapeDtypeStruct((b, c, hw), x_nchw.dtype)),
        grid=(b,),
        in_specs=[
            pl.BlockSpec((cq, c), lambda i: (0, 0)),
            pl.BlockSpec((cq, c), lambda i: (0, 0)),
            pl.BlockSpec((c, c), lambda i: (0, 0)),
            pl.BlockSpec((None, c, hw), lambda i: (i, 0, 0)),
        ],
        out_specs=(pl.BlockSpec((None, cq, hw), lambda i: (i, 0, 0)),
                   pl.BlockSpec((None, cq, hw), lambda i: (i, 0, 0)),
                   pl.BlockSpec((None, c, hw), lambda i: (i, 0, 0))),
        compiler_params=pltpu.CompilerParams(dimension_semantics=("parallel",)),
    )(wq, wk, wv_g, x_cm)

    mq = cq * hw // axis
    mv = c * hw // axis
    # Contiguous reshapes == torch .view on contiguous NCHW tensors (no copy).
    q_r = q.reshape(b, mq, axis)
    k_r = k.reshape(b, mq, axis)
    v_r = v.reshape(b, mv, axis)
    x_r = x_cm.reshape(b, mv, axis)

    # Fused: sigmoid(q^T k), v @ att^T, residual add — nothing spills to HBM.
    out = pl.pallas_call(
        _axial_attn_kernel,
        out_shape=jax.ShapeDtypeStruct((b, mv, axis), x_nchw.dtype),
        grid=(b,),
        in_specs=[
            pl.BlockSpec((None, mq, axis), lambda i: (i, 0, 0)),
            pl.BlockSpec((None, mq, axis), lambda i: (i, 0, 0)),
            pl.BlockSpec((None, mv, axis), lambda i: (i, 0, 0)),
            pl.BlockSpec((None, mv, axis), lambda i: (i, 0, 0)),
        ],
        out_specs=pl.BlockSpec((None, mv, axis), lambda i: (i, 0, 0)),
        compiler_params=pltpu.CompilerParams(dimension_semantics=("parallel",)),
    )(q_r, k_r, v_r, x_r)

    return out.reshape(b, c, h, wd)


@jax.jit
def aa_kernel_forward(x, params):
    """AA_kernel.forward: conv0(1x1) -> conv1(3x3) -> Hattn -> Wattn."""
    y = conv1x1(x, params['w0'])
    y = conv3x3(y, params['w1'])
    hx = self_attn(y, params['h_wq'], params['h_wk'], params['h_wv'],
                   params['h_gamma'], mode='h')
    wx = self_attn(hx, params['w_wq'], params['w_wk'], params['w_wv'],
                   params['w_gamma'], mode='w')
    return wx


# ---------------------------------------------------------------------------
# Pure-JAX reference mirroring the PyTorch AA_kernel forward
# ---------------------------------------------------------------------------

def aa_kernel_ref(x, p):
    hi = lax.Precision.HIGHEST

    def conv1x1_ref(x, w):
        return jnp.einsum('oi,bihw->bohw', w, x, precision=hi)

    def conv3x3_ref(x, w):
        return lax.conv_general_dilated(
            x, w, window_strides=(1, 1), padding=((1, 1), (1, 1)),
            dimension_numbers=('NCHW', 'OIHW', 'NCHW'), precision=hi)

    def self_attn_ref(x, wq, wk, wv, gamma, mode):
        b, c, h, w = x.shape
        axis = 1
        if 'h' in mode:
            axis *= h
        if 'w' in mode:
            axis *= w
        q = conv1x1_ref(x, wq).reshape(b, -1, axis)
        k = conv1x1_ref(x, wk).reshape(b, -1, axis)
        v = conv1x1_ref(x, wv).reshape(b, -1, axis)
        att = jax.nn.sigmoid(jnp.einsum('bma,bmc->bac', q, k, precision=hi))
        out = jnp.einsum('bma,bca->bmc', v, att, precision=hi)
        return gamma * out.reshape(b, c, h, w) + x

    y = conv1x1_ref(x, p['w0'])
    y = conv3x3_ref(y, p['w1'])
    hx = self_attn_ref(y, p['h_wq'], p['h_wk'], p['h_wv'], p['h_gamma'], 'h')
    wx = self_attn_ref(hx, p['w_wq'], p['w_wk'], p['w_wv'], p['w_gamma'], 'w')
    return wx


if __name__ == "__main__":
    key = jax.random.PRNGKey(0)
    ks = jax.random.split(key, 9)

    B, C_IN, C_OUT, H, W = 2, 16, 16, 16, 8       # H != W exercises both modes
    CQ = C_OUT // 8

    x = jax.random.normal(ks[0], (B, C_IN, H, W), dtype=jnp.float32)
    params = dict(
        w0=0.2 * jax.random.normal(ks[1], (C_OUT, C_IN), jnp.float32),
        w1=0.1 * jax.random.normal(ks[2], (C_OUT, C_OUT, 3, 3), jnp.float32),
        h_wq=0.2 * jax.random.normal(ks[3], (CQ, C_OUT), jnp.float32),
        h_wk=0.2 * jax.random.normal(ks[4], (CQ, C_OUT), jnp.float32),
        h_wv=0.2 * jax.random.normal(ks[5], (C_OUT, C_OUT), jnp.float32),
        h_gamma=jnp.array([0.5], jnp.float32),    # nn.Parameter(torch.zeros(1)), perturbed
        w_wq=0.2 * jax.random.normal(ks[6], (CQ, C_OUT), jnp.float32),
        w_wk=0.2 * jax.random.normal(ks[7], (CQ, C_OUT), jnp.float32),
        w_wv=0.2 * jax.random.normal(ks[8], (C_OUT, C_OUT), jnp.float32),
        w_gamma=jnp.array([0.7], jnp.float32),
    )

    out = jax.block_until_ready(aa_kernel_forward(x, params))
    ref = jax.block_until_ready(aa_kernel_ref(x, params))

    assert out.shape == (B, C_OUT, H, W)
    max_err = float(jnp.max(jnp.abs(out - ref)))
    assert jnp.allclose(out, ref, atol=2e-3, rtol=2e-3), max_err
    print("KERNEL_OK")
</pallas_src>

<mosaic_0001>
module attributes {stable_mosaic.version = 11 : i64} {
  func.func @_channel_matmul_kernel(%arg0: i32, %arg1: memref<16x16xf32, #tpu.memory_space<vmem>>, %arg2: memref<1x16x128xf32, #tpu.memory_space<vmem>>, %arg3: memref<1x16x128xf32, #tpu.memory_space<vmem>>) attributes {dimension_semantics = [#tpu.dimension_semantics<parallel>], iteration_bounds = array<i64: 2>, scalar_prefetch = 0 : i64, scratch_operands = 0 : i64, tpu.core_type = #tpu.core_type<tc>, window_params = [{pipeline_mode = #tpu.pipeline_mode<synchronous>, transform_indices = @transform_0, window_bounds = array<i64: 16, 16>}, {transform_indices = @transform_1, window_bounds = array<i64: 1, 16, 128>}, {transform_indices = @transform_2, window_bounds = array<i64: 1, 16, 128>}]} {
    %c0 = arith.constant 0 : index
    %c0_0 = arith.constant 0 : index
    %0 = vector.load %arg1[%c0, %c0_0] : memref<16x16xf32, #tpu.memory_space<vmem>>, vector<16x16xf32>
    %c0_1 = arith.constant 0 : index
    %c0_2 = arith.constant 0 : index
    %c0_3 = arith.constant 0 : index
    %1 = vector.load %arg2[%c0_1, %c0_2, %c0_3] : memref<1x16x128xf32, #tpu.memory_space<vmem>>, vector<1x16x128xf32>
    %2 = vector.shape_cast %1 : vector<1x16x128xf32> to vector<16x128xf32>
    %cst = arith.constant dense<0.000000e+00> : vector<16x128xf32>
    %3 = tpu.matmul %0, %2, %cst {dimension_numbers = #tpu.dot_dimension_numbers<[1], [0], [0], [1], [0, 0, 1, 1], [], []>} : vector<16x16xf32>, vector<16x128xf32>, vector<16x128xf32> -> vector<16x128xf32>
    %c0_4 = arith.constant 0 : index
    %c0_5 = arith.constant 0 : index
    %c0_6 = arith.constant 0 : index
    %4 = vector.load %arg3[%c0_4, %c0_5, %c0_6] : memref<1x16x128xf32, #tpu.memory_space<vmem>>, vector<1x16x128xf32>
    %5 = vector.shape_cast %4 : vector<1x16x128xf32> to vector<16x128xf32>
    %6 = vector.shape_cast %3 : vector<16x128xf32> to vector<1x16x128xf32>
    tpu.vector_store %arg3[%c0_4, %c0_5, %c0_6], %6 {strides = array<i32>} : memref<1x16x128xf32, #tpu.memory_space<vmem>>, vector<1x16x128xf32>,
    return
  }
  func.func @transform_0(%arg0: i32) -> (i32, i32) {
    %c0_i32 = arith.constant 0 : i32
    %c0_i32_0 = arith.constant 0 : i32
    %c0_i32_1 = arith.constant 0 : i32
    return %c0_i32, %c0_i32_0 : i32, i32
  }
  func.func @transform_1(%arg0: i32) -> (i32, i32, i32) {
    %c0_i32 = arith.constant 0 : i32
    %c0_i32_0 = arith.constant 0 : i32
    %c0_i32_1 = arith.constant 0 : i32
    return %arg0, %c0_i32, %c0_i32_0 : i32, i32, i32
  }
  func.func @transform_2(%arg0: i32) -> (i32, i32, i32) {
    %c0_i32 = arith.constant 0 : i32
    %c0_i32_0 = arith.constant 0 : i32
    %c0_i32_1 = arith.constant 0 : i32
    return %arg0, %c0_i32, %c0_i32_0 : i32, i32, i32
  }
}

module attributes {stable_mosaic.version = 11 : i64} {
  func.func @_channel_matmul_kernel(%arg0: i32, %arg1: memref<16x144xf32, #tpu.memory_space<vmem>>, %arg2: memref<1x144x128xf32, #tpu.memory_space<vmem>>, %arg3: memref<1x16x128xf32, #tpu.memory_space<vmem>>) attributes {dimension_semantics = [#tpu.dimension_semantics<parallel>], iteration_bounds = array<i64: 2>, scalar_prefetch = 0 : i64, scratch_operands = 0 : i64, tpu.core_type = #tpu.core_type<tc>, window_params = [{pipeline_mode = #tpu.pipeline_mode<synchronous>, transform_indices = @transform_0, window_bounds = array<i64: 16, 144>}, {transform_indices = @transform_1, window_bounds = array<i64: 1, 144, 128>}, {transform_indices = @transform_2, window_bounds = array<i64: 1, 16, 128>}]} {
    %c0 = arith.constant 0 : index
    %c0_0 = arith.constant 0 : index
    %0 = vector.load %arg1[%c0, %c0_0] : memref<16x144xf32, #tpu.memory_space<vmem>>, vector<16x144xf32>
    %c0_1 = arith.constant 0 : index
    %c0_2 = arith.constant 0 : index
    %c0_3 = arith.constant 0 : index
    %1 = vector.load %arg2[%c0_1, %c0_2, %c0_3] : memref<1x144x128xf32, #tpu.memory_space<vmem>>, vector<1x144x128xf32>
    %2 = vector.shape_cast %1 : vector<1x144x128xf32> to vector<144x128xf32>
    %cst = arith.constant dense<0.000000e+00> : vector<16x128xf32>
    %3 = tpu.matmul %0, %2, %cst {dimension_numbers = #tpu.dot_dimension_numbers<[1], [0], [0], [1], [0, 0, 1, 1], [], []>} : vector<16x144xf32>, vector<144x128xf32>, vector<16x128xf32> -> vector<16x128xf32>
    %c0_4 = arith.constant 0 : index
    %c0_5 = arith.constant 0 : index
    %c0_6 = arith.constant 0 : index
    %4 = vector.load %arg3[%c0_4, %c0_5, %c0_6] : memref<1x16x128xf32, #tpu.memory_space<vmem>>, vector<1x16x128xf32>
    %5 = vector.shape_cast %4 : vector<1x16x128xf32> to vector<16x128xf32>
    %6 = vector.shape_cast %3 : vector<16x128xf32> to vector<1x16x128xf32>
    tpu.vector_store %arg3[%c0_4, %c0_5, %c0_6], %6 {strides = array<i32>} : memref<1x16x128xf32, #tpu.memory_space<vmem>>, vector<1x16x128xf32>,
    return
  }
  func.func @transform_0(%arg0: i32) -> (i32, i32) {
    %c0_i32 = arith.constant 0 : i32
    %c0_i32_0 = arith.constant 0 : i32
    %c0_i32_1 = arith.constant 0 : i32
    return %c0_i32, %c0_i32_0 : i32, i32
  }
  func.func @transform_1(%arg0: i32) -> (i32, i32, i32) {
    %c0_i32 = arith.constant 0 : i32
    %c0_i32_0 = arith.constant 0 : i32
    %c0_i32_1 = arith.constant 0 : i32
    return %arg0, %c0_i32, %c0_i32_0 : i32, i32, i32
  }
  func.func @transform_2(%arg0: i32) -> (i32, i32, i32) {
    %c0_i32 = arith.constant 0 : i32
    %c0_i32_0 = arith.constant 0 : i32
    %c0_i32_1 = arith.constant 0 : i32
    return %arg0, %c0_i32, %c0_i32_0 : i32, i32, i32
  }
}

module attributes {stable_mosaic.version = 11 : i64} {
  func.func @_qkv_kernel(%arg0: i32, %arg1: memref<2x16xf32, #tpu.memory_space<vmem>>, %arg2: memref<2x16xf32, #tpu.memory_space<vmem>>, %arg3: memref<16x16xf32, #tpu.memory_space<vmem>>, %arg4: memref<1x16x128xf32, #tpu.memory_space<vmem>>, %arg5: memref<1x2x128xf32, #tpu.memory_space<vmem>>, %arg6: memref<1x2x128xf32, #tpu.memory_space<vmem>>, %arg7: memref<1x16x128xf32, #tpu.memory_space<vmem>>) attributes {dimension_semantics = [#tpu.dimension_semantics<parallel>], iteration_bounds = array<i64: 2>, scalar_prefetch = 0 : i64, scratch_operands = 0 : i64, tpu.core_type = #tpu.core_type<tc>, window_params = [{pipeline_mode = #tpu.pipeline_mode<synchronous>, transform_indices = @transform_0, window_bounds = array<i64: 2, 16>}, {pipeline_mode = #tpu.pipeline_mode<synchronous>, transform_indices = @transform_1, window_bounds = array<i64: 2, 16>}, {pipeline_mode = #tpu.pipeline_mode<synchronous>, transform_indices = @transform_2, window_bounds = array<i64: 16, 16>}, {transform_indices = @transform_3, window_bounds = array<i64: 1, 16, 128>}, {transform_indices = @transform_4, window_bounds = array<i64: 1, 2, 128>}, {transform_indices = @transform_5, window_bounds = array<i64: 1, 2, 128>}, {transform_indices = @transform_6, window_bounds = array<i64: 1, 16, 128>}]} {
    %c0 = arith.constant 0 : index
    %c0_0 = arith.constant 0 : index
    %c0_1 = arith.constant 0 : index
    %0 = vector.load %arg4[%c0, %c0_0, %c0_1] : memref<1x16x128xf32, #tpu.memory_space<vmem>>, vector<1x16x128xf32>
    %1 = vector.shape_cast %0 : vector<1x16x128xf32> to vector<16x128xf32>
    %c0_2 = arith.constant 0 : index
    %c0_3 = arith.constant 0 : index
    %2 = vector.load %arg1[%c0_2, %c0_3] : memref<2x16xf32, #tpu.memory_space<vmem>>, vector<2x16xf32>
    %cst = arith.constant dense<0.000000e+00> : vector<2x128xf32>
    %3 = tpu.matmul %2, %1, %cst {dimension_numbers = #tpu.dot_dimension_numbers<[1], [0], [0], [1], [0, 0, 1, 1], [], []>} : vector<2x16xf32>, vector<16x128xf32>, vector<2x128xf32> -> vector<2x128xf32>
    %c0_4 = arith.constant 0 : index
    %c0_5 = arith.constant 0 : index
    %c0_6 = arith.constant 0 : index
    %4 = vector.load %arg5[%c0_4, %c0_5, %c0_6] : memref<1x2x128xf32, #tpu.memory_space<vmem>>, vector<1x2x128xf32>
    %5 = vector.shape_cast %4 : vector<1x2x128xf32> to vector<2x128xf32>
    %6 = vector.shape_cast %3 : vector<2x128xf32> to vector<1x2x128xf32>
    tpu.vector_store %arg5[%c0_4, %c0_5, %c0_6], %6 {strides = array<i32>} : memref<1x2x128xf32, #tpu.memory_space<vmem>>, vector<1x2x128xf32>,
    %c0_7 = arith.constant 0 : index
    %c0_8 = arith.constant 0 : index
    %7 = vector.load %arg2[%c0_7, %c0_8] : memref<2x16xf32, #tpu.memory_space<vmem>>, vector<2x16xf32>
    %cst_9 = arith.constant dense<0.000000e+00> : vector<2x128xf32>
    %8 = tpu.matmul %7, %1, %cst_9 {dimension_numbers = #tpu.dot_dimension_numbers<[1], [0], [0], [1], [0, 0, 1, 1], [], []>} : vector<2x16xf32>, vector<16x128xf32>, vector<2x128xf32> -> vector<2x128xf32>
    %c0_10 = arith.constant 0 : index
    %c0_11 = arith.constant 0 : index
    %c0_12 = arith.constant 0 : index
    %9 = vector.load %arg6[%c0_10, %c0_11, %c0_12] : memref<1x2x128xf32, #tpu.memory_space<vmem>>, vector<1x2x128xf32>
    %10 = vector.shape_cast %9 : vector<1x2x128xf32> to vector<2x128xf32>
    %11 = vector.shape_cast %8 : vector<2x128xf32> to vector<1x2x128xf32>
    tpu.vector_store %arg6[%c0_10, %c0_11, %c0_12], %11 {strides = array<i32>} : memref<1x2x128xf32, #tpu.memory_space<vmem>>, vector<1x2x128xf32>,
    %c0_13 = arith.constant 0 : index
    %c0_14 = arith.constant 0 : index
    %12 = vector.load %arg3[%c0_13, %c0_14] : memref<16x16xf32, #tpu.memory_space<vmem>>, vector<16x16xf32>
    %cst_15 = arith.constant dense<0.000000e+00> : vector<16x128xf32>
    %13 = tpu.matmul %12, %1, %cst_15 {dimension_numbers = #tpu.dot_dimension_numbers<[1], [0], [0], [1], [0, 0, 1, 1], [], []>} : vector<16x16xf32>, vector<16x128xf32>, vector<16x128xf32> -> vector<16x128xf32>
    %c0_16 = arith.constant 0 : index
    %c0_17 = arith.constant 0 : index
    %c0_18 = arith.constant 0 : index
    %14 = vector.load %arg7[%c0_16, %c0_17, %c0_18] : memref<1x16x128xf32, #tpu.memory_space<vmem>>, vector<1x16x128xf32>
    %15 = vector.shape_cast %14 : vector<1x16x128xf32> to vector<16x128xf32>
    %16 = vector.shape_cast %13 : vector<16x128xf32> to vector<1x16x128xf32>
    tpu.vector_store %arg7[%c0_16, %c0_17, %c0_18], %16 {strides = array<i32>} : memref<1x16x128xf32, #tpu.memory_space<vmem>>, vector<1x16x128xf32>,
    return
  }
  func.func @transform_0(%arg0: i32) -> (i32, i32) {
    %c0_i32 = arith.constant 0 : i32
    %c0_i32_0 = arith.constant 0 : i32
    %c0_i32_1 = arith.constant 0 : i32
    return %c0_i32, %c0_i32_0 : i32, i32
  }
  func.func @transform_1(%arg0: i32) -> (i32, i32) {
    %c0_i32 = arith.constant 0 : i32
    %c0_i32_0 = arith.constant 0 : i32
    %c0_i32_1 = arith.constant 0 : i32
    return %c0_i32, %c0_i32_0 : i32, i32
  }
  func.func @transform_2(%arg0: i32) -> (i32, i32) {
    %c0_i32 = arith.constant 0 : i32
    %c0_i32_0 = arith.constant 0 : i32
    %c0_i32_1 = arith.constant 0 : i32
    return %c0_i32, %c0_i32_0 : i32, i32
  }
  func.func @transform_3(%arg0: i32) -> (i32, i32, i32) {
    %c0_i32 = arith.constant 0 : i32
    %c0_i32_0 = arith.constant 0 : i32
    %c0_i32_1 = arith.constant 0 : i32
    return %arg0, %c0_i32, %c0_i32_0 : i32, i32, i32
  }
  func.func @transform_4(%arg0: i32) -> (i32, i32, i32) {
    %c0_i32 = arith.constant 0 : i32
    %c0_i32_0 = arith.constant 0 : i32
    %c0_i32_1 = arith.constant 0 : i32
    return %arg0, %c0_i32, %c0_i32_0 : i32, i32, i32
  }
  func.func @transform_5(%arg0: i32) -> (i32, i32, i32) {
    %c0_i32 = arith.constant 0 : i32
    %c0_i32_0 = arith.constant 0 : i32
    %c0_i32_1 = arith.constant 0 : i32
    return %arg0, %c0_i32, %c0_i32_0 : i32, i32, i32
  }
  func.func @transform_6(%arg0: i32) -> (i32, i32, i32) {
    %c0_i32 = arith.constant 0 : i32
    %c0_i32_0 = arith.constant 0 : i32
    %c0_i32_1 = arith.constant 0 : i32
    return %arg0, %c0_i32, %c0_i32_0 : i32, i32, i32
  }
}

module attributes {stable_mosaic.version = 11 : i64} {
  func.func @_axial_attn_kernel(%arg0: i32, %arg1: memref<1x16x16xf32, #tpu.memory_space<vmem>>, %arg2: memref<1x16x16xf32, #tpu.memory_space<vmem>>, %arg3: memref<1x128x16xf32, #tpu.memory_space<vmem>>, %arg4: memref<1x128x16xf32, #tpu.memory_space<vmem>>, %arg5: memref<1x128x16xf32, #tpu.memory_space<vmem>>) attributes {dimension_semantics = [#tpu.dimension_semantics<parallel>], iteration_bounds = array<i64: 2>, scalar_prefetch = 0 : i64, scratch_operands = 0 : i64, tpu.core_type = #tpu.core_type<tc>, window_params = [{transform_indices = @transform_0, window_bounds = array<i64: 1, 16, 16>}, {transform_indices = @transform_1, window_bounds = array<i64: 1, 16, 16>}, {transform_indices = @transform_2, window_bounds = array<i64: 1, 128, 16>}, {transform_indices = @transform_3, window_bounds = array<i64: 1, 128, 16>}, {transform_indices = @transform_4, window_bounds = array<i64: 1, 128, 16>}]} {
    %c0 = arith.constant 0 : index
    %c0_0 = arith.constant 0 : index
    %c0_1 = arith.constant 0 : index
    %0 = vector.load %arg1[%c0, %c0_0, %c0_1] : memref<1x16x16xf32, #tpu.memory_space<vmem>>, vector<1x16x16xf32>
    %1 = vector.shape_cast %0 : vector<1x16x16xf32> to vector<16x16xf32>
    %c0_2 = arith.constant 0 : index
    %c0_3 = arith.constant 0 : index
    %c0_4 = arith.constant 0 : index
    %2 = vector.load %arg2[%c0_2, %c0_3, %c0_4] : memref<1x16x16xf32, #tpu.memory_space<vmem>>, vector<1x16x16xf32>
    %3 = vector.shape_cast %2 : vector<1x16x16xf32> to vector<16x16xf32>
    %cst = arith.constant dense<0.000000e+00> : vector<16x16xf32>
    %4 = tpu.matmul %1, %3, %cst {dimension_numbers = #tpu.dot_dimension_numbers<[0], [0], [1], [1], [0, 1, 1, 1], [], []>} : vector<16x16xf32>, vector<16x16xf32>, vector<16x16xf32> -> vector<16x16xf32>
    %cst_5 = arith.constant 0.000000e+00 : f32
    %5 = vector.broadcast %cst_5 : f32 to vector<16x16xf32>
    %6 = arith.subf %5, %4 : vector<16x16xf32>
    %7 = math.exp %6 : vector<16x16xf32>
    %cst_6 = arith.constant 1.000000e+00 : f32
    %8 = vector.broadcast %cst_6 : f32 to vector<16x16xf32>
    %9 = arith.addf %8, %7 : vector<16x16xf32>
    %cst_7 = arith.constant 1.000000e+00 : f32
    %10 = vector.broadcast %cst_7 : f32 to vector<16x16xf32>
    %11 = arith.divf %10, %9 : vector<16x16xf32>
    %c0_8 = arith.constant 0 : index
    %c0_9 = arith.constant 0 : index
    %c0_10 = arith.constant 0 : index
    %12 = vector.load %arg3[%c0_8, %c0_9, %c0_10] : memref<1x128x16xf32, #tpu.memory_space<vmem>>, vector<1x128x16xf32>
    %13 = vector.shape_cast %12 : vector<1x128x16xf32> to vector<128x16xf32>
    %cst_11 = arith.constant dense<0.000000e+00> : vector<128x16xf32>
    %14 = tpu.matmul %13, %11, %cst_11 {dimension_numbers = #tpu.dot_dimension_numbers<[1], [1], [0], [0], [0, 0, 1, 0], [], []>} : vector<128x16xf32>, vector<16x16xf32>, vector<128x16xf32> -> vector<128x16xf32>
    %c0_12 = arith.constant 0 : index
    %c0_13 = arith.constant 0 : index
    %c0_14 = arith.constant 0 : index
    %15 = vector.load %arg4[%c0_12, %c0_13, %c0_14] : memref<1x128x16xf32, #tpu.memory_space<vmem>>, vector<1x128x16xf32>
    %16 = vector.shape_cast %15 : vector<1x128x16xf32> to vector<128x16xf32>
    %17 = arith.addf %14, %16 : vector<128x16xf32>
    %c0_15 = arith.constant 0 : index
    %c0_16 = arith.constant 0 : index
    %c0_17 = arith.constant 0 : index
    %18 = vector.load %arg5[%c0_15, %c0_16, %c0_17] : memref<1x128x16xf32, #tpu.memory_space<vmem>>, vector<1x128x16xf32>
    %19 = vector.shape_cast %18 : vector<1x128x16xf32> to vector<128x16xf32>
    %20 = vector.shape_cast %17 : vector<128x16xf32> to vector<1x128x16xf32>
    tpu.vector_store %arg5[%c0_15, %c0_16, %c0_17], %20 {strides = array<i32>} : memref<1x128x16xf32, #tpu.memory_space<vmem>>, vector<1x128x16xf32>,
    return
  }
  func.func @transform_0(%arg0: i32) -> (i32, i32, i32) {
    %c0_i32 = arith.constant 0 : i32
    %c0_i32_0 = arith.constant 0 : i32
    %c0_i32_1 = arith.constant 0 : i32
    return %arg0, %c0_i32, %c0_i32_0 : i32, i32, i32
  }
  func.func @transform_1(%arg0: i32) -> (i32, i32, i32) {
    %c0_i32 = arith.constant 0 : i32
    %c0_i32_0 = arith.constant 0 : i32
    %c0_i32_1 = arith.constant 0 : i32
    return %arg0, %c0_i32, %c0_i32_0 : i32, i32, i32
  }
  func.func @transform_2(%arg0: i32) -> (i32, i32, i32) {
    %c0_i32 = arith.constant 0 : i32
    %c0_i32_0 = arith.constant 0 : i32
    %c0_i32_1 = arith.constant 0 : i32
    return %arg0, %c0_i32, %c0_i32_0 : i32, i32, i32
  }
  func.func @transform_3(%arg0: i32) -> (i32, i32, i32) {
    %c0_i32 = arith.constant 0 : i32
    %c0_i32_0 = arith.constant 0 : i32
    %c0_i32_1 = arith.constant 0 : i32
    return %arg0, %c0_i32, %c0_i32_0 : i32, i32, i32
  }
  func.func @transform_4(%arg0: i32) -> (i32, i32, i32) {
    %c0_i32 = arith.constant 0 : i32
    %c0_i32_0 = arith.constant 0 : i32
    %c0_i32_1 = arith.constant 0 : i32
    return %arg0, %c0_i32, %c0_i32_0 : i32, i32, i32
  }
}

module attributes {stable_mosaic.version = 11 : i64} {
  func.func @_axial_attn_kernel(%arg0: i32, %arg1: memref<1x32x8xf32, #tpu.memory_space<vmem>>, %arg2: memref<1x32x8xf32, #tpu.memory_space<vmem>>, %arg3: memref<1x256x8xf32, #tpu.memory_space<vmem>>, %arg4: memref<1x256x8xf32, #tpu.memory_space<vmem>>, %arg5: memref<1x256x8xf32, #tpu.memory_space<vmem>>) attributes {dimension_semantics = [#tpu.dimension_semantics<parallel>], iteration_bounds = array<i64: 2>, scalar_prefetch = 0 : i64, scratch_operands = 0 : i64, tpu.core_type = #tpu.core_type<tc>, window_params = [{transform_indices = @transform_0, window_bounds = array<i64: 1, 32, 8>}, {transform_indices = @transform_1, window_bounds = array<i64: 1, 32, 8>}, {transform_indices = @transform_2, window_bounds = array<i64: 1, 256, 8>}, {transform_indices = @transform_3, window_bounds = array<i64: 1, 256, 8>}, {transform_indices = @transform_4, window_bounds = array<i64: 1, 256, 8>}]} {
    %c0 = arith.constant 0 : index
    %c0_0 = arith.constant 0 : index
    %c0_1 = arith.constant 0 : index
    %0 = vector.load %arg1[%c0, %c0_0, %c0_1] : memref<1x32x8xf32, #tpu.memory_space<vmem>>, vector<1x32x8xf32>
    %1 = vector.shape_cast %0 : vector<1x32x8xf32> to vector<32x8xf32>
    %c0_2 = arith.constant 0 : index
    %c0_3 = arith.constant 0 : index
    %c0_4 = arith.constant 0 : index
    %2 = vector.load %arg2[%c0_2, %c0_3, %c0_4] : memref<1x32x8xf32, #tpu.memory_space<vmem>>, vector<1x32x8xf32>
    %3 = vector.shape_cast %2 : vector<1x32x8xf32> to vector<32x8xf32>
    %cst = arith.constant dense<0.000000e+00> : vector<8x8xf32>
    %4 = tpu.matmul %1, %3, %cst {dimension_numbers = #tpu.dot_dimension_numbers<[0], [0], [1], [1], [0, 1, 1, 1], [], []>} : vector<32x8xf32>, vector<32x8xf32>, vector<8x8xf32> -> vector<8x8xf32>
    %cst_5 = arith.constant 0.000000e+00 : f32
    %5 = vector.broadcast %cst_5 : f32 to vector<8x8xf32>
    %6 = arith.subf %5, %4 : vector<8x8xf32>
    %7 = math.exp %6 : vector<8x8xf32>
    %cst_6 = arith.constant 1.000000e+00 : f32
    %8 = vector.broadcast %cst_6 : f32 to vector<8x8xf32>
    %9 = arith.addf %8, %7 : vector<8x8xf32>
    %cst_7 = arith.constant 1.000000e+00 : f32
    %10 = vector.broadcast %cst_7 : f32 to vector<8x8xf32>
    %11 = arith.divf %10, %9 : vector<8x8xf32>
    %c0_8 = arith.constant 0 : index
    %c0_9 = arith.constant 0 : index
    %c0_10 = arith.constant 0 : index
    %12 = vector.load %arg3[%c0_8, %c0_9, %c0_10] : memref<1x256x8xf32, #tpu.memory_space<vmem>>, vector<1x256x8xf32>
    %13 = vector.shape_cast %12 : vector<1x256x8xf32> to vector<256x8xf32>
    %cst_11 = arith.constant dense<0.000000e+00> : vector<256x8xf32>
    %14 = tpu.matmul %13, %11, %cst_11 {dimension_numbers = #tpu.dot_dimension_numbers<[1], [1], [0], [0], [0, 0, 1, 0], [], []>} : vector<256x8xf32>, vector<8x8xf32>, vector<256x8xf32> -> vector<256x8xf32>
    %c0_12 = arith.constant 0 : index
    %c0_13 = arith.constant 0 : index
    %c0_14 = arith.constant 0 : index
    %15 = vector.load %arg4[%c0_12, %c0_13, %c0_14] : memref<1x256x8xf32, #tpu.memory_space<vmem>>, vector<1x256x8xf32>
    %16 = vector.shape_cast %15 : vector<1x256x8xf32> to vector<256x8xf32>
    %17 = arith.addf %14, %16 : vector<256x8xf32>
    %c0_15 = arith.constant 0 : index
    %c0_16 = arith.constant 0 : index
    %c0_17 = arith.constant 0 : index
    %18 = vector.load %arg5[%c0_15, %c0_16, %c0_17] : memref<1x256x8xf32, #tpu.memory_space<vmem>>, vector<1x256x8xf32>
    %19 = vector.shape_cast %18 : vector<1x256x8xf32> to vector<256x8xf32>
    %20 = vector.shape_cast %17 : vector<256x8xf32> to vector<1x256x8xf32>
    tpu.vector_store %arg5[%c0_15, %c0_16, %c0_17], %20 {strides = array<i32>} : memref<1x256x8xf32, #tpu.memory_space<vmem>>, vector<1x256x8xf32>,
    return
  }
  func.func @transform_0(%arg0: i32) -> (i32, i32, i32) {
    %c0_i32 = arith.constant 0 : i32
    %c0_i32_0 = arith.constant 0 : i32
    %c0_i32_1 = arith.constant 0 : i32
    return %arg0, %c0_i32, %c0_i32_0 : i32, i32, i32
  }
  func.func @transform_1(%arg0: i32) -> (i32, i32, i32) {
    %c0_i32 = arith.constant 0 : i32
    %c0_i32_0 = arith.constant 0 : i32
    %c0_i32_1 = arith.constant 0 : i32
    return %arg0, %c0_i32, %c0_i32_0 : i32, i32, i32
  }
  func.func @transform_2(%arg0: i32) -> (i32, i32, i32) {
    %c0_i32 = arith.constant 0 : i32
    %c0_i32_0 = arith.constant 0 : i32
    %c0_i32_1 = arith.constant 0 : i32
    return %arg0, %c0_i32, %c0_i32_0 : i32, i32, i32
  }
  func.func @transform_3(%arg0: i32) -> (i32, i32, i32) {
    %c0_i32 = arith.constant 0 : i32
    %c0_i32_0 = arith.constant 0 : i32
    %c0_i32_1 = arith.constant 0 : i32
    return %arg0, %c0_i32, %c0_i32_0 : i32, i32, i32
  }
  func.func @transform_4(%arg0: i32) -> (i32, i32, i32) {
    %c0_i32 = arith.constant 0 : i32
    %c0_i32_0 = arith.constant 0 : i32
    %c0_i32_1 = arith.constant 0 : i32
    return %arg0, %c0_i32, %c0_i32_0 : i32, i32, i32
  }
}

</mosaic_0001>

<llo_original>
// kernel: aa_kernel_forward.6
$region0: #{aa_kernel_forward.6}
  #allocation0 [shape = 'u32[]', space=smem, size = 0x4, offset = 0x4, fixed_abs, tag = 'smem constant byte address 0x4 - core index']
  #allocation1 [shape = 'u32[144,128]{1,0:T(1,128)}', space=vmem, size = 0x12000, scoped, tag = 'internal scratch']
  %s0 = inlined_call_operand.hbm [shape: f32[16,16], index: 0, kind: input, shape index: {}]
  %s1 = inlined_call_operand.vmem [shape: f32[2,16,128], index: 1, kind: input, shape index: {}]
  %s2 = inlined_call_operand.vmem [shape: f32[2,16,128], index: 2, kind: output, shape index: {}]
  %s3 = sld [smem:[#allocation0]]
  $region45: #{aa_kernel_forward.6} parent=0
    _
  %s5 = ssub.s32 1, %s3
  %s6 = scalar_select 0, %s5, %s3
  $region1: #{aa_kernel_forward.6} parent=0
    #allocation2 [shape = 'u8[8192]{0}', space=vmem, size = 0x2000, scoped, tag = 'input window, operand 0, single buffered']
    #allocation3 [shape = 's32[2]{0}', space=sflag, size = 0x8, scoped, tag = 'scoped memory for aa_kernel_forward.6']
    %7 = vsyncpa [#allocation3], 0
    loop: start=0, step=1, limit=4
    $region2: #{aa_kernel_forward.6} parent=1 // loop_pre_header
      _
    $region3: #{aa_kernel_forward.6} parent=1 // loop_header
      %s9 = sphi 0, %s13
      %p10 = scmp.ge.s32.totalorder %s9, 4
      %s17 = sphi 0, %s17
      %s19 = sphi 0, %s17
      %s20 = sphi 0, %s19
      %s34 = sphi 0, %s20
      %s40 = sphi 0, %s42
      %s43 = sphi 0, %s40
      %s44 = sphi 0, %s43
      %s60 = sphi 0, %s44
      %s66 = sphi 0, %s68
      %s69 = sphi 0, %s66
      %s70 = sphi 0, %s69
      %s86 = sphi 0, %s70
    $region4: #{aa_kernel_forward.6} parent=1 // loop_header_branch
      %12 = sbr.rel (%p10) target = $region8
    $region5: #{aa_kernel_forward.6} parent=1 // loop_body
      %s14 = ssub.s32 %s9, 1
      %s15 = ssub.s32 %s9, 2
      %s16 = sadd.s32 %s9, 1
      %s18 = sadd.s32 %s17, 1
      %p21 = scmp.eq.s32.totalorder %s9, 1
      %p22 = scmp.ne.s32.totalorder %s17, %s19
      %p23 = scmp.eq.s32.totalorder %s9, 0
      %p24 = por %p22, %p23
      %p25 = scmp.ne.s32.totalorder %s17, %s19
      %p26 = scmp.eq.s32.totalorder %s14, 1
      %p27 = por %p25, %p26
      %p28 = scmp.ne.s32.totalorder %s19, %s20
      %p29 = scmp.eq.s32.totalorder %s14, 0
      %p30 = por %p28, %p29
      %p31 = scmp.ne.s32.totalorder %s19, %s20
      %p32 = scmp.eq.s32.totalorder %s15, 1
      %p33 = por %p31, %p32
      %p35 = scmp.ne.s32.totalorder %s20, %s34
      %p36 = scmp.eq.s32.totalorder %s15, 0
      %p37 = por %p35, %p36
      %s38 = ssub.s32 %s9, %s16
      %p39 = scmp.eq.s32.totalorder %s38, 0
      %s41 = sadd.s32 %s40, 1
      %s42 = scalar_select %p39, %s40, %s41
      %p45 = pneg %p39
      %p46 = scmp.eq.s32.totalorder %s9, 1
      %p47 = por %p45, %p46
      %p48 = scmp.ne.s32.totalorder %s40, %s43
      %p49 = scmp.eq.s32.totalorder %s9, 0
      %p50 = por %p48, %p49
      %p51 = scmp.ne.s32.totalorder %s40, %s43
      %p52 = scmp.eq.s32.totalorder %s14, 1
      %p53 = por %p51, %p52
      %p54 = scmp.ne.s32.totalorder %s43, %s44
      %p55 = scmp.eq.s32.totalorder %s14, 0
      %p56 = por %p54, %p55
      %p57 = scmp.ne.s32.totalorder %s43, %s44
      %p58 = scmp.eq.s32.totalorder %s15, 1
      %p59 = por %p57, %p58
      %p61 = scmp.ne.s32.totalorder %s44, %s60
      %p62 = scmp.eq.s32.totalorder %s15, 0
      %p63 = por %p61, %p62
      %s64 = ssub.s32 %s9, %s16
      %p65 = scmp.eq.s32.totalorder %s64, 0
      %s67 = sadd.s32 %s66, 1
      %s68 = scalar_select %p65, %s66, %s67
      %p71 = pneg %p65
      %p72 = scmp.eq.s32.totalorder %s9, 1
      %p73 = por %p71, %p72
      %p74 = scmp.ne.s32.totalorder %s66, %s69
      %p75 = scmp.eq.s32.totalorder %s9, 0
      %p76 = por %p74, %p75
      %p77 = scmp.ne.s32.totalorder %s66, %s69
      %p78 = scmp.eq.s32.totalorder %s14, 1
      %p79 = por %p77, %p78
      %p80 = scmp.ne.s32.totalorder %s69, %s70
      %p81 = scmp.eq.s32.totalorder %s14, 0
      %p82 = por %p80, %p81
      %p83 = scmp.ne.s32.totalorder %s69, %s70
      %p84 = scmp.eq.s32.totalorder %s15, 1
      %p85 = por %p83, %p84
      %p87 = scmp.ne.s32.totalorder %s70, %s86
      %p88 = scmp.eq.s32.totalorder %s15, 0
      %p89 = por %p87, %p88
      %p90 = scmp.le.s32.totalorder 1, %s9
      %p91 = scmp.lt.s32.totalorder %s9, 3
      %p92 = pnand %p90, %p91
      %p93 = pneg %p92
      // Predicated region
      $region9: #{aa_kernel_forward.6} parent=5 // pred_check
        _
      $region10: #{aa_kernel_forward.6} parent=5 // pred_check_branch
        %95 = sbr.rel (%p92) target = $region12
      $region11: #{aa_kernel_forward.6} parent=5 // pred_region
        %s96 = ssub.s32 %s9, 1
        // Predicated region
        $region13: #{aa_kernel_forward.6} parent=11 // pred_check
          %p97 = pneg %p30
        $region14: #{aa_kernel_forward.6} parent=11 // pred_check_branch
          %99 = sbr.rel (%p97) target = $region16
        $region15: #{aa_kernel_forward.6} parent=11 // pred_region
          %s101 = ssub.s32 256, 256
          %102 = vsyncadd [#allocation3], %s101
          %s103 = sshll.u32 [#allocation2], 4
          %s104 = int_to_ptr.vmem [resolvable:$true] %s103
          %109 = dma.hbm_to_vmem [thread:$0]  %s0, 256, %s104, [#allocation3], 128, 128, 8
        $region16: #{aa_kernel_forward.6} parent=11 // pred_fallthru
          _
      $region12: #{aa_kernel_forward.6} parent=5 // pred_fallthru
        _
      %p110 = scmp.lt.s32.totalorder %s9, 2
      // Predicated region
      $region17: #{aa_kernel_forward.6} parent=5 // pred_check
        %p111 = pneg %p110
      $region18: #{aa_kernel_forward.6} parent=5 // pred_check_branch
        %113 = sbr.rel (%p111) target = $region20
      $region19: #{aa_kernel_forward.6} parent=5 // pred_region
        // Predicated region
        $region21: #{aa_kernel_forward.6} parent=19 // pred_check
          %p114 = pneg %p50
        $region22: #{aa_kernel_forward.6} parent=19 // pred_check_branch
          %116 = sbr.rel (%p114) target = $region24
        $region23: #{aa_kernel_forward.6} parent=19 // pred_region
          %p117 = scmp.lt.s32.totalorder %s9, 1
          %s118 = scalar_select %p117, %s9, 1
          %s119 = smul.addr %s118, 2
          %s120 = smul.addr %s119, 8
          %s121 = scalar_lea.vmem %s1, %s120
        $region24: #{aa_kernel_forward.6} parent=19 // pred_fallthru
          _
      $region20: #{aa_kernel_forward.6} parent=5 // pred_fallthru
        _
      %p122 = scmp.le.s32.totalorder 1, %s9
      %p123 = scmp.lt.s32.totalorder %s9, 3
      %p124 = pnand %p122, %p123
      %p125 = pneg %p124
      // Predicated region
      $region25: #{aa_kernel_forward.6} parent=5 // pred_check
        _
      $region26: #{aa_kernel_forward.6} parent=5 // pred_check_branch
        %127 = sbr.rel (%p124) target = $region28
      $region27: #{aa_kernel_forward.6} parent=5 // pred_region
        %s128 = ssub.s32 %s9, 1
        // Predicated region
        $region29: #{aa_kernel_forward.6} parent=27 // pred_check
          %p129 = pneg %p30
        $region30: #{aa_kernel_forward.6} parent=27 // pred_check_branch
          %131 = sbr.rel (%p129) target = $region32
        $region31: #{aa_kernel_forward.6} parent=27 // pred_region
          %132 = dma.done [#allocation3], 256
        $region32: #{aa_kernel_forward.6} parent=27 // pred_fallthru
          _
        %p133 = pneg %p30
        %p134 = pneg %p27
        %p135 = scmp.lt.s32.totalorder %s14, 1
        %s136 = scalar_select %p135, %s14, 1
        %s137 = smul.addr %s136, 2
        %s138 = smul.addr %s137, 8
        %s139 = scalar_lea.vmem %s1, %s138
        %p140 = pneg %p56
        %p141 = pneg %p53
        %p142 = pneg %p82
        %p143 = pneg %p79
        %p144 = scmp.lt.s32.totalorder %s14, 1
        %s145 = scalar_select %p144, %s14, 1
        %s146 = smul.addr %s145, 2
        %s147 = smul.addr %s146, 8
        %s148 = scalar_lea.vmem %s2, %s147
        %p149 = scmp.lt.s32.totalorder %s14, 1
        %s150 = scalar_select %p149, %s14, 1
        %s151 = smul.addr %s150, 2
        %s152 = smul.addr %s151, 8
        %s153 = scalar_lea.vmem %s1, %s152
        %p154 = scmp.lt.s32.totalorder %s14, 1
        %s155 = scalar_select %p154, %s14, 1
        %s156 = smul.addr %s155, 2
        %s157 = smul.addr %s156, 8
        %s158 = scalar_lea.vmem %s2, %s157
        %v159 = vld [vmem:[#allocation2] sm:$0xff]
        %v160 = vld [vmem:[#allocation2 + $0x8] sm:$0xff]
        %v161 = vld [vmem:[%s153] sm:$0xff]
        %v162 = vld [vmem:[%s153 + $0x8] sm:$0xff]
        %vm163 = vcmask 130048
        %v165 = vsel %vm163, %v159, 0
        %v168 = vsel %vm163, %v160, 0
        %170 = vmatprep.subr.mxu0 0.0
        %171 = vmatpush1.msra.mxu0 0.0
        %172 = vmatprep.subr.mxu0 0.0
        %173 = vmatpush1.msra.mxu0 0.0
        %174 = vmatprep.subr.mxu0 0.0
        %175 = vmatpush1.msra.mxu0 0.0
        %176 = vmatprep.subr.mxu0 0.0
        %177 = vmatpush1.msra.mxu0 0.0
        %178 = vmatprep.subr.mxu0 0.0
        %179 = vmatpush1.msra.mxu0 0.0
        %180 = vmatprep.subr.mxu0 0.0
        %181 = vmatpush1.msra.mxu0 0.0
        %182 = vmatprep.subr.mxu0 0.0
        %183 = vmatpush1.msra.mxu0 0.0
        %184 = vmatprep.subr.mxu0 0.0
        %185 = vmatpush1.msra.mxu0 0.0
        %186 = vmatprep.subr.mxu0 0.0
        %187 = vmatpush1.msra.mxu0 0.0
        %188 = vmatprep.subr.mxu0 0.0
        %189 = vmatpush1.msra.mxu0 0.0
        %190 = vmatprep.subr.mxu0 0.0
        %191 = vmatpush1.msra.mxu0 0.0
        %192 = vmatprep.subr.mxu0 0.0
        %193 = vmatpush1.msra.mxu0 0.0
        %194 = vmatprep.subr.mxu0 0.0
        %195 = vmatpush1.msra.mxu0 0.0
        %196 = vmatprep.subr.mxu0 0.0
        %197 = vmatpush1.msra.mxu0 0.0
        %198 = vmatprep.subr.mxu0 0.0
        %199 = vmatpush1.msra.mxu0 %v162
        %200 = vmatprep.subr.mxu0 0.0
        %201 = vmatpush1.msra.mxu0 %v161
        %202 = vmatprep.subr.mxu0 0.0
        %203 = vmatpush2.msra.mxu0 0.0
        %204 = vmatprep.subr.mxu0 0.0
        %205 = vmatpush2.msra.mxu0 0.0
        %206 = vmatprep.subr.mxu0 0.0
        %207 = vmatpush2.msra.mxu0 0.0
        %208 = vmatprep.subr.mxu0 0.0
        %209 = vmatpush2.msra.mxu0 0.0
        %210 = vmatprep.subr.mxu0 0.0
        %211 = vmatpush2.msra.mxu0 0.0
        %212 = vmatprep.subr.mxu0 0.0
        %213 = vmatpush2.msra.mxu0 0.0
        %214 = vmatprep.subr.mxu0 0.0
        %215 = vmatpush2.msra.mxu0 0.0
        %216 = vmatprep.subr.mxu0 0.0
        %217 = vmatpush2.msra.mxu0 0.0
        %218 = vmatprep.subr.mxu0 0.0
        %219 = vmatpush2.msra.mxu0 0.0
        %220 = vmatprep.subr.mxu0 0.0
        %221 = vmatpush2.msra.mxu0 0.0
        %222 = vmatprep.subr.mxu0 0.0
        %223 = vmatpush2.msra.mxu0 0.0
        %224 = vmatprep.subr.mxu0 0.0
        %225 = vmatpush2.msra.mxu0 0.0
        %226 = vmatprep.subr.mxu0 0.0
        %227 = vmatpush2.msra.mxu0 0.0
        %228 = vmatprep.subr.mxu0 0.0
        %229 = vmatpush2.msra.mxu0 0.0
        %230 = vmatprep.subr.mxu0 0.0
        %231 = vmatpush2.msra.mxu0 0.0
        %232 = vmatprep.subr.mxu0 0.0
        %233 = vmatpush2.msra.mxu0 0.0
        %234 = vmatprep.mubr.f32.mxu0 0.0
        %235 = vmatmul.mubr.f32.gmra.mxu0 %v165
        %v236 = vpop.f32.mrf.mxu0
        %v237 = vadd.f32 0.0, %v236
        %v238 = vpop.f32.mrf.mxu0
        %239 = vmatprep.mubr.f32.mxu0 0.0
        %240 = vmatmul.mubr.f32.gmra.mxu0 %v168
        %v241 = vpop.f32.mrf.mxu0
        %v242 = vadd.f32 0.0, %v241
        %v243 = vpop.f32.mrf.mxu0
        %244 = vdwg.mxu0
        %245 = vst [vmem:[%s158] sm:$0xff] %v237
        %246 = vst [vmem:[%s158 + $0x8] sm:$0xff] %v242
        %p247 = scmp.lt.s32.totalorder %s14, 1
        %s248 = scalar_select %p247, %s14, 1
        %s249 = smul.addr %s248, 2
        %s250 = smul.addr %s249, 8
        %s251 = scalar_lea.vmem %s2, %s250
        // Predicated region
        $region33: #{aa_kernel_forward.6} parent=27 // pred_check
          %p252 = pneg %p79
        $region34: #{aa_kernel_forward.6} parent=27 // pred_check_branch
          %254 = sbr.rel (%p252) target = $region36
        $region35: #{aa_kernel_forward.6} parent=27 // pred_region
          _
        $region36: #{aa_kernel_forward.6} parent=27 // pred_fallthru
          _
      $region28: #{aa_kernel_forward.6} parent=5 // pred_fallthru
        _
      %p255 = scmp.le.s32.totalorder 2, %s9
      // Predicated region
      $region37: #{aa_kernel_forward.6} parent=5 // pred_check
        %p256 = pneg %p255
      $region38: #{aa_kernel_forward.6} parent=5 // pred_check_branch
        %258 = sbr.rel (%p256) target = $region40
      $region39: #{aa_kernel_forward.6} parent=5 // pred_region
        %s259 = ssub.s32 %s9, 2
        // Predicated region
        $region41: #{aa_kernel_forward.6} parent=39 // pred_check
          %p260 = pneg %p85
        $region42: #{aa_kernel_forward.6} parent=39 // pred_check_branch
          %262 = sbr.rel (%p260) target = $region44
        $region43: #{aa_kernel_forward.6} parent=39 // pred_region
          %p263 = scmp.lt.s32.totalorder %s15, 1
          %s264 = scalar_select %p263, %s15, 1
          %s265 = smul.addr %s264, 2
          %s266 = smul.addr %s265, 8
          %s267 = scalar_lea.vmem %s2, %s266
        $region44: #{aa_kernel_forward.6} parent=39 // pred_fallthru
          _
      $region40: #{aa_kernel_forward.6} parent=5 // pred_fallthru
        _
    $region6: #{aa_kernel_forward.6} parent=1 // loop_footer
      %s13 = sadd.s32 1, %s9
    $region7: #{aa_kernel_forward.6} parent=1 // loop_footer_branch
      %8 = sbr.rel target = $region3
    $region8: #{aa_kernel_forward.6} parent=1 // loop_exit
      _
    %268 = vsyncpa [#allocation3], 1
    %s269 = scalar_lea.sflag [#allocation3], 1
    %270 = vsyncpa %s269, 1

// kernel: aa_kernel_forward.7
$region0: #{aa_kernel_forward.7}
  #allocation0 [shape = 'u32[]', space=smem, size = 0x4, offset = 0x4, fixed_abs, tag = 'smem constant byte address 0x4 - core index']
  #allocation1 [shape = 'u32[144,128]{1,0:T(1,128)}', space=vmem, size = 0x12000, scoped, tag = 'internal scratch']
  %s0 = inlined_call_operand.vmem [shape: f32[16,144], index: 0, kind: input, shape index: {}]
  %s1 = inlined_call_operand.vmem [shape: f32[2,144,128], index: 1, kind: input, shape index: {}]
  %s2 = inlined_call_operand.vmem [shape: f32[2,16,128], index: 2, kind: output, shape index: {}]
  %s3 = sld [smem:[#allocation0]]
  $region41: #{aa_kernel_forward.7} parent=0
    _
  %s5 = ssub.s32 1, %s3
  %s6 = scalar_select 0, %s5, %s3
  loop: start=0, step=1, limit=4
  $region2: #{aa_kernel_forward.7} parent=0 // loop_pre_header
    _
  $region3: #{aa_kernel_forward.7} parent=0 // loop_header
    %s8 = sphi 0, %s12
    %p9 = scmp.ge.s32.totalorder %s8, 4
    %s16 = sphi 0, %s16
    %s18 = sphi 0, %s16
    %s19 = sphi 0, %s18
    %s33 = sphi 0, %s19
    %s39 = sphi 0, %s41
    %s42 = sphi 0, %s39
    %s43 = sphi 0, %s42
    %s59 = sphi 0, %s43
    %s65 = sphi 0, %s67
    %s68 = sphi 0, %s65
    %s69 = sphi 0, %s68
    %s85 = sphi 0, %s69
  $region4: #{aa_kernel_forward.7} parent=0 // loop_header_branch
    %11 = sbr.rel (%p9) target = $region8
  $region5: #{aa_kernel_forward.7} parent=0 // loop_body
    %s13 = ssub.s32 %s8, 1
    %s14 = ssub.s32 %s8, 2
    %s15 = sadd.s32 %s8, 1
    %s17 = sadd.s32 %s16, 1
    %p20 = scmp.eq.s32.totalorder %s8, 1
    %p21 = scmp.ne.s32.totalorder %s16, %s18
    %p22 = scmp.eq.s32.totalorder %s8, 0
    %p23 = por %p21, %p22
    %p24 = scmp.ne.s32.totalorder %s16, %s18
    %p25 = scmp.eq.s32.totalorder %s13, 1
    %p26 = por %p24, %p25
    %p27 = scmp.ne.s32.totalorder %s18, %s19
    %p28 = scmp.eq.s32.totalorder %s13, 0
    %p29 = por %p27, %p28
    %p30 = scmp.ne.s32.totalorder %s18, %s19
    %p31 = scmp.eq.s32.totalorder %s14, 1
    %p32 = por %p30, %p31
    %p34 = scmp.ne.s32.totalorder %s19, %s33
    %p35 = scmp.eq.s32.totalorder %s14, 0
    %p36 = por %p34, %p35
    %s37 = ssub.s32 %s8, %s15
    %p38 = scmp.eq.s32.totalorder %s37, 0
    %s40 = sadd.s32 %s39, 1
    %s41 = scalar_select %p38, %s39, %s40
    %p44 = pneg %p38
    %p45 = scmp.eq.s32.totalorder %s8, 1
    %p46 = por %p44, %p45
    %p47 = scmp.ne.s32.totalorder %s39, %s42
    %p48 = scmp.eq.s32.totalorder %s8, 0
    %p49 = por %p47, %p48
    %p50 = scmp.ne.s32.totalorder %s39, %s42
    %p51 = scmp.eq.s32.totalorder %s13, 1
    %p52 = por %p50, %p51
    %p53 = scmp.ne.s32.totalorder %s42, %s43
    %p54 = scmp.eq.s32.totalorder %s13, 0
    %p55 = por %p53, %p54
    %p56 = scmp.ne.s32.totalorder %s42, %s43
    %p57 = scmp.eq.s32.totalorder %s14, 1
    %p58 = por %p56, %p57
    %p60 = scmp.ne.s32.totalorder %s43, %s59
    %p61 = scmp.eq.s32.totalorder %s14, 0
    %p62 = por %p60, %p61
    %s63 = ssub.s32 %s8, %s15
    %p64 = scmp.eq.s32.totalorder %s63, 0
    %s66 = sadd.s32 %s65, 1
    %s67 = scalar_select %p64, %s65, %s66
    %p70 = pneg %p64
    %p71 = scmp.eq.s32.totalorder %s8, 1
    %p72 = por %p70, %p71
    %p73 = scmp.ne.s32.totalorder %s65, %s68
    %p74 = scmp.eq.s32.totalorder %s8, 0
    %p75 = por %p73, %p74
    %p76 = scmp.ne.s32.totalorder %s65, %s68
    %p77 = scmp.eq.s32.totalorder %s13, 1
    %p78 = por %p76, %p77
    %p79 = scmp.ne.s32.totalorder %s68, %s69
    %p80 = scmp.eq.s32.totalorder %s13, 0
    %p81 = por %p79, %p80
    %p82 = scmp.ne.s32.totalorder %s68, %s69
    %p83 = scmp.eq.s32.totalorder %s14, 1
    %p84 = por %p82, %p83
    %p86 = scmp.ne.s32.totalorder %s69, %s85
    %p87 = scmp.eq.s32.totalorder %s14, 0
    %p88 = por %p86, %p87
    %p89 = scmp.le.s32.totalorder 1, %s8
    %p90 = scmp.lt.s32.totalorder %s8, 3
    %p91 = pnand %p89, %p90
    %p92 = pneg %p91
    // Predicated region
    $region9: #{aa_kernel_forward.7} parent=5 // pred_check
      _
    $region10: #{aa_kernel_forward.7} parent=5 // pred_check_branch
      %94 = sbr.rel (%p91) target = $region12
    $region11: #{aa_kernel_forward.7} parent=5 // pred_region
      %s95 = ssub.s32 %s8, 1
      // Predicated region
      $region13: #{aa_kernel_forward.7} parent=11 // pred_check
        %p96 = pneg %p29
      $region14: #{aa_kernel_forward.7} parent=11 // pred_check_branch
        %98 = sbr.rel (%p96) target = $region16
      $region15: #{aa_kernel_forward.7} parent=11 // pred_region
        _
      $region16: #{aa_kernel_forward.7} parent=11 // pred_fallthru
        _
    $region12: #{aa_kernel_forward.7} parent=5 // pred_fallthru
      _
    %p99 = scmp.lt.s32.totalorder %s8, 2
    // Predicated region
    $region17: #{aa_kernel_forward.7} parent=5 // pred_check
      %p100 = pneg %p99
    $region18: #{aa_kernel_forward.7} parent=5 // pred_check_branch
      %102 = sbr.rel (%p100) target = $region20
    $region19: #{aa_kernel_forward.7} parent=5 // pred_region
      // Predicated region
      $region21: #{aa_kernel_forward.7} parent=19 // pred_check
        %p103 = pneg %p49
      $region22: #{aa_kernel_forward.7} parent=19 // pred_check_branch
        %105 = sbr.rel (%p103) target = $region24
      $region23: #{aa_kernel_forward.7} parent=19 // pred_region
        %p106 = scmp.lt.s32.totalorder %s8, 1
        %s107 = scalar_select %p106, %s8, 1
        %s108 = smul.addr %s107, 18
        %s109 = smul.addr %s108, 8
        %s110 = scalar_lea.vmem %s1, %s109
      $region24: #{aa_kernel_forward.7} parent=19 // pred_fallthru
        _
    $region20: #{aa_kernel_forward.7} parent=5 // pred_fallthru
      _
    %p111 = scmp.le.s32.totalorder 1, %s8
    %p112 = scmp.lt.s32.totalorder %s8, 3
    %p113 = pnand %p111, %p112
    %p114 = pneg %p113
    // Predicated region
    $region25: #{aa_kernel_forward.7} parent=5 // pred_check
      _
    $region26: #{aa_kernel_forward.7} parent=5 // pred_check_branch
      %116 = sbr.rel (%p113) target = $region28
    $region27: #{aa_kernel_forward.7} parent=5 // pred_region
      %s117 = ssub.s32 %s8, 1
      %p118 = pneg %p29
      %p119 = pneg %p26
      %p120 = scmp.lt.s32.totalorder %s13, 1
      %s121 = scalar_select %p120, %s13, 1
      %s122 = smul.addr %s121, 18
      %s123 = smul.addr %s122, 8
      %s124 = scalar_lea.vmem %s1, %s123
      %p125 = pneg %p55
      %p126 = pneg %p52
      %p127 = pneg %p81
      %p128 = pneg %p78
      %p129 = scmp.lt.s32.totalorder %s13, 1
      %s130 = scalar_select %p129, %s13, 1
      %s131 = smul.addr %s130, 2
      %s132 = smul.addr %s131, 8
      %s133 = scalar_lea.vmem %s2, %s132
      %p134 = scmp.lt.s32.totalorder %s13, 1
      %s135 = scalar_select %p134, %s13, 1
      %s136 = smul.addr %s135, 18
      %s137 = smul.addr %s136, 8
      %s138 = scalar_lea.vmem %s1, %s137
      %p139 = scmp.lt.s32.totalorder %s13, 1
      %s140 = scalar_select %p139, %s13, 1
      %s141 = smul.addr %s140, 2
      %s142 = smul.addr %s141, 8
      %s143 = scalar_lea.vmem %s2, %s142
      %v144 = vld [vmem:[%s0] sm:$0xff]
      %v145 = vld [vmem:[%s0 + $0x8] sm:$0xff]
      %v146 = vld [vmem:[%s0 + $0x10] sm:$0xff]
      %v147 = vld [vmem:[%s0 + $0x18] sm:$0xff]
      %v148 = vld [vmem:[%s138] sm:$0xff]
      %v149 = vld [vmem:[%s138 + $0x8] sm:$0xff]
      %v150 = vld [vmem:[%s138 + $0x10] sm:$0xff]
      %v151 = vld [vmem:[%s138 + $0x18] sm:$0xff]
      %v152 = vld [vmem:[%s138 + $0x20] sm:$0xff]
      %v153 = vld [vmem:[%s138 + $0x28] sm:$0xff]
      %v154 = vld [vmem:[%s138 + $0x30] sm:$0xff]
      %v155 = vld [vmem:[%s138 + $0x38] sm:$0xff]
      %v156 = vld [vmem:[%s138 + $0x40] sm:$0xff]
      %v157 = vld [vmem:[%s138 + $0x48] sm:$0xff]
      %v158 = vld [vmem:[%s138 + $0x50] sm:$0xff]
      %v159 = vld [vmem:[%s138 + $0x58] sm:$0xff]
      %v160 = vld [vmem:[%s138 + $0x60] sm:$0xff]
      %v161 = vld [vmem:[%s138 + $0x68] sm:$0xff]
      %v162 = vld [vmem:[%s138 + $0x70] sm:$0xff]
      %v163 = vld [vmem:[%s138 + $0x78] sm:$0xff]
      %v164 = vld [vmem:[%s138 + $0x80] sm:$0xff]
      %v165 = vld [vmem:[%s138 + $0x88] sm:$0xff]
      %vm166 = vcmask 130048
      %v168 = vsel %vm166, %v145, 0
      %v171 = vsel %vm166, %v147, 0
      %173 = vmatprep.subr.mxu0 0.0
      %174 = vmatpush1.msra.mxu0 %v163
      %175 = vmatprep.subr.mxu0 0.0
      %176 = vmatpush1.msra.mxu0 %v162
      %177 = vmatprep.subr.mxu0 0.0
      %178 = vmatpush1.msra.mxu0 %v161
      %179 = vmatprep.subr.mxu0 0.0
      %180 = vmatpush1.msra.mxu0 %v160
      %181 = vmatprep.subr.mxu0 0.0
      %182 = vmatpush1.msra.mxu0 %v159
      %183 = vmatprep.subr.mxu0 0.0
      %184 = vmatpush1.msra.mxu0 %v158
      %185 = vmatprep.subr.mxu0 0.0
      %186 = vmatpush1.msra.mxu0 %v157
      %187 = vmatprep.subr.mxu0 0.0
      %188 = vmatpush1.msra.mxu0 %v156
      %189 = vmatprep.subr.mxu0 0.0
      %190 = vmatpush1.msra.mxu0 %v155
      %191 = vmatprep.subr.mxu0 0.0
      %192 = vmatpush1.msra.mxu0 %v154
      %193 = vmatprep.subr.mxu0 0.0
      %194 = vmatpush1.msra.mxu0 %v153
      %195 = vmatprep.subr.mxu0 0.0
      %196 = vmatpush1.msra.mxu0 %v152
      %197 = vmatprep.subr.mxu0 0.0
      %198 = vmatpush1.msra.mxu0 %v151
      %199 = vmatprep.subr.mxu0 0.0
      %200 = vmatpush1.msra.mxu0 %v150
      %201 = vmatprep.subr.mxu0 0.0
      %202 = vmatpush1.msra.mxu0 %v149
      %203 = vmatprep.subr.mxu0 0.0
      %204 = vmatpush1.msra.mxu0 %v148
      %205 = vmatprep.subr.mxu0 0.0
      %206 = vmatpush2.msra.mxu0 0.0
      %207 = vmatprep.subr.mxu0 0.0
      %208 = vmatpush2.msra.mxu0 0.0
      %209 = vmatprep.subr.mxu0 0.0
      %210 = vmatpush2.msra.mxu0 0.0
      %211 = vmatprep.subr.mxu0 0.0
      %212 = vmatpush2.msra.mxu0 0.0
      %213 = vmatprep.subr.mxu0 0.0
      %214 = vmatpush2.msra.mxu0 0.0
      %215 = vmatprep.subr.mxu0 0.0
      %216 = vmatpush2.msra.mxu0 0.0
      %217 = vmatprep.subr.mxu0 0.0
      %218 = vmatpush2.msra.mxu0 0.0
      %219 = vmatprep.subr.mxu0 0.0
      %220 = vmatpush2.msra.mxu0 0.0
      %221 = vmatprep.subr.mxu0 0.0
      %222 = vmatpush2.msra.mxu0 0.0
      %223 = vmatprep.subr.mxu0 0.0
      %224 = vmatpush2.msra.mxu0 0.0
      %225 = vmatprep.subr.mxu0 0.0
      %226 = vmatpush2.msra.mxu0 0.0
      %227 = vmatprep.subr.mxu0 0.0
      %228 = vmatpush2.msra.mxu0 0.0
      %229 = vmatprep.subr.mxu0 0.0
      %230 = vmatpush2.msra.mxu0 0.0
      %231 = vmatprep.subr.mxu0 0.0
      %232 = vmatpush2.msra.mxu0 0.0
      %233 = vmatprep.subr.mxu0 0.0
      %234 = vmatpush2.msra.mxu0 %v165
      %235 = vmatprep.subr.mxu0 0.0
      %236 = vmatpush2.msra.mxu0 %v164
      %237 = vmatprep.mubr.f32.mxu0 %v168
      %238 = vmatmul.mubr.f32.gmra.mxu0 %v144
      %v239 = vpop.f32.mrf.mxu0
      %v240 = vadd.f32 0.0, %v239
      %v241 = vpop.f32.mrf.mxu0
      %242 = vmatprep.mubr.f32.mxu0 %v171
      %243 = vmatmul.mubr.f32.gmra.mxu0 %v146
      %v244 = vpop.f32.mrf.mxu0
      %v245 = vadd.f32 0.0, %v244
      %v246 = vpop.f32.mrf.mxu0
      %247 = vdwg.mxu0
      %248 = vst [vmem:[%s143] sm:$0xff] %v240
      %249 = vst [vmem:[%s143 + $0x8] sm:$0xff] %v245
      %p250 = scmp.lt.s32.totalorder %s13, 1
      %s251 = scalar_select %p250, %s13, 1
      %s252 = smul.addr %s251, 2
      %s253 = smul.addr %s252, 8
      %s254 = scalar_lea.vmem %s2, %s253
      // Predicated region
      $region29: #{aa_kernel_forward.7} parent=27 // pred_check
        %p255 = pneg %p78
      $region30: #{aa_kernel_forward.7} parent=27 // pred_check_branch
        %257 = sbr.rel (%p255) target = $region32
      $region31: #{aa_kernel_forward.7} parent=27 // pred_region
        _
      $region32: #{aa_kernel_forward.7} parent=27 // pred_fallthru
        _
    $region28: #{aa_kernel_forward.7} parent=5 // pred_fallthru
      _
    %p258 = scmp.le.s32.totalorder 2, %s8
    // Predicated region
    $region33: #{aa_kernel_forward.7} parent=5 // pred_check
      %p259 = pneg %p258
    $region34: #{aa_kernel_forward.7} parent=5 // pred_check_branch
      %261 = sbr.rel (%p259) target = $region36
    $region35: #{aa_kernel_forward.7} parent=5 // pred_region
      %s262 = ssub.s32 %s8, 2
      // Predicated region
      $region37: #{aa_kernel_forward.7} parent=35 // pred_check
        %p263 = pneg %p84
      $region38: #{aa_kernel_forward.7} parent=35 // pred_check_branch
        %265 = sbr.rel (%p263) target = $region40
      $region39: #{aa_kernel_forward.7} parent=35 // pred_region
        %p266 = scmp.lt.s32.totalorder %s14, 1
        %s267 = scalar_select %p266, %s14, 1
        %s268 = smul.addr %s267, 2
        %s269 = smul.addr %s268, 8
        %s270 = scalar_lea.vmem %s2, %s269
      $region40: #{aa_kernel_forward.7} parent=35 // pred_fallthru
        _
    $region36: #{aa_kernel_forward.7} parent=5 // pred_fallthru
      _
  $region6: #{aa_kernel_forward.7} parent=0 // loop_footer
    %s12 = sadd.s32 1, %s8
  $region7: #{aa_kernel_forward.7} parent=0 // loop_footer_branch
    %7 = sbr.rel target = $region3
  $region8: #{aa_kernel_forward.7} parent=0 // loop_exit
    _

// kernel: aa_kernel_forward.8
$region0: #{aa_kernel_forward.8}
  #allocation0 [shape = 'u32[]', space=smem, size = 0x4, offset = 0x4, fixed_abs, tag = 'smem constant byte address 0x4 - core index']
  #allocation1 [shape = 'u32[144,128]{1,0:T(1,128)}', space=vmem, size = 0x12000, scoped, tag = 'internal scratch']
  %s0 = inlined_call_operand.vmem [shape: f32[2,16], index: 0, kind: input, shape index: {}]
  %s1 = inlined_call_operand.vmem [shape: f32[2,16], index: 1, kind: input, shape index: {}]
  %s2 = inlined_call_operand.vmem [shape: f32[16,16], index: 2, kind: input, shape index: {}]
  %s3 = inlined_call_operand.vmem [shape: f32[2,16,128], index: 3, kind: input, shape index: {}]
  %s4 = inlined_call_operand.vmem [shape: f32[2,2,128], index: 4, kind: output, shape index: {0}]
  %s5 = inlined_call_operand.vmem [shape: f32[2,2,128], index: 5, kind: output, shape index: {1}]
  %s6 = inlined_call_operand.vmem [shape: f32[2,16,128], index: 6, kind: output, shape index: {2}]
  %7 = xla_tuple %s4, %s5, %s6
  %s8 = sld [smem:[#allocation0]]
  $region65: #{aa_kernel_forward.8} parent=0
    _
  %s10 = ssub.s32 1, %s8
  %s11 = scalar_select 0, %s10, %s8
  loop: start=0, step=1, limit=4
  $region2: #{aa_kernel_forward.8} parent=0 // loop_pre_header
    _
  $region3: #{aa_kernel_forward.8} parent=0 // loop_header
    %s13 = sphi 0, %s17
    %p14 = scmp.ge.s32.totalorder %s13, 4
    %s21 = sphi 0, %s21
    %s23 = sphi 0, %s21
    %s24 = sphi 0, %s23
    %s38 = sphi 0, %s24
    %s42 = sphi 0, %s42
    %s44 = sphi 0, %s42
    %s45 = sphi 0, %s44
    %s59 = sphi 0, %s45
    %s63 = sphi 0, %s63
    %s65 = sphi 0, %s63
    %s66 = sphi 0, %s65
    %s80 = sphi 0, %s66
    %s86 = sphi 0, %s88
    %s89 = sphi 0, %s86
    %s90 = sphi 0, %s89
    %s106 = sphi 0, %s90
    %s112 = sphi 0, %s114
    %s115 = sphi 0, %s112
    %s116 = sphi 0, %s115
    %s132 = sphi 0, %s116
    %s138 = sphi 0, %s140
    %s141 = sphi 0, %s138
    %s142 = sphi 0, %s141
    %s158 = sphi 0, %s142
    %s164 = sphi 0, %s166
    %s167 = sphi 0, %s164
    %s168 = sphi 0, %s167
    %s184 = sphi 0, %s168
  $region4: #{aa_kernel_forward.8} parent=0 // loop_header_branch
    %16 = sbr.rel (%p14) target = $region8
  $region5: #{aa_kernel_forward.8} parent=0 // loop_body
    %s18 = ssub.s32 %s13, 1
    %s19 = ssub.s32 %s13, 2
    %s20 = sadd.s32 %s13, 1
    %s22 = sadd.s32 %s21, 1
    %p25 = scmp.eq.s32.totalorder %s13, 1
    %p26 = scmp.ne.s32.totalorder %s21, %s23
    %p27 = scmp.eq.s32.totalorder %s13, 0
    %p28 = por %p26, %p27
    %p29 = scmp.ne.s32.totalorder %s21, %s23
    %p30 = scmp.eq.s32.totalorder %s18, 1
    %p31 = por %p29, %p30
    %p32 = scmp.ne.s32.totalorder %s23, %s24
    %p33 = scmp.eq.s32.totalorder %s18, 0
    %p34 = por %p32, %p33
    %p35 = scmp.ne.s32.totalorder %s23, %s24
    %p36 = scmp.eq.s32.totalorder %s19, 1
    %p37 = por %p35, %p36
    %p39 = scmp.ne.s32.totalorder %s24, %s38
    %p40 = scmp.eq.s32.totalorder %s19, 0
    %p41 = por %p39, %p40
    %s43 = sadd.s32 %s42, 1
    %p46 = scmp.eq.s32.totalorder %s13, 1
    %p47 = scmp.ne.s32.totalorder %s42, %s44
    %p48 = scmp.eq.s32.totalorder %s13, 0
    %p49 = por %p47, %p48
    %p50 = scmp.ne.s32.totalorder %s42, %s44
    %p51 = scmp.eq.s32.totalorder %s18, 1
    %p52 = por %p50, %p51
    %p53 = scmp.ne.s32.totalorder %s44, %s45
    %p54 = scmp.eq.s32.totalorder %s18, 0
    %p55 = por %p53, %p54
    %p56 = scmp.ne.s32.totalorder %s44, %s45
    %p57 = scmp.eq.s32.totalorder %s19, 1
    %p58 = por %p56, %p57
    %p60 = scmp.ne.s32.totalorder %s45, %s59
    %p61 = scmp.eq.s32.totalorder %s19, 0
    %p62 = por %p60, %p61
    %s64 = sadd.s32 %s63, 1
    %p67 = scmp.eq.s32.totalorder %s13, 1
    %p68 = scmp.ne.s32.totalorder %s63, %s65
    %p69 = scmp.eq.s32.totalorder %s13, 0
    %p70 = por %p68, %p69
    %p71 = scmp.ne.s32.totalorder %s63, %s65
    %p72 = scmp.eq.s32.totalorder %s18, 1
    %p73 = por %p71, %p72
    %p74 = scmp.ne.s32.totalorder %s65, %s66
    %p75 = scmp.eq.s32.totalorder %s18, 0
    %p76 = por %p74, %p75
    %p77 = scmp.ne.s32.totalorder %s65, %s66
    %p78 = scmp.eq.s32.totalorder %s19, 1
    %p79 = por %p77, %p78
    %p81 = scmp.ne.s32.totalorder %s66, %s80
    %p82 = scmp.eq.s32.totalorder %s19, 0
    %p83 = por %p81, %p82
    %s84 = ssub.s32 %s13, %s20
    %p85 = scmp.eq.s32.totalorder %s84, 0
    %s87 = sadd.s32 %s86, 1
    %s88 = scalar_select %p85, %s86, %s87
    %p91 = pneg %p85
    %p92 = scmp.eq.s32.totalorder %s13, 1
    %p93 = por %p91, %p92
    %p94 = scmp.ne.s32.totalorder %s86, %s89
    %p95 = scmp.eq.s32.totalorder %s13, 0
    %p96 = por %p94, %p95
    %p97 = scmp.ne.s32.totalorder %s86, %s89
    %p98 = scmp.eq.s32.totalorder %s18, 1
    %p99 = por %p97, %p98
    %p100 = scmp.ne.s32.totalorder %s89, %s90
    %p101 = scmp.eq.s32.totalorder %s18, 0
    %p102 = por %p100, %p101
    %p103 = scmp.ne.s32.totalorder %s89, %s90
    %p104 = scmp.eq.s32.totalorder %s19, 1
    %p105 = por %p103, %p104
    %p107 = scmp.ne.s32.totalorder %s90, %s106
    %p108 = scmp.eq.s32.totalorder %s19, 0
    %p109 = por %p107, %p108
    %s110 = ssub.s32 %s13, %s20
    %p111 = scmp.eq.s32.totalorder %s110, 0
    %s113 = sadd.s32 %s112, 1
    %s114 = scalar_select %p111, %s112, %s113
    %p117 = pneg %p111
    %p118 = scmp.eq.s32.totalorder %s13, 1
    %p119 = por %p117, %p118
    %p120 = scmp.ne.s32.totalorder %s112, %s115
    %p121 = scmp.eq.s32.totalorder %s13, 0
    %p122 = por %p120, %p121
    %p123 = scmp.ne.s32.totalorder %s112, %s115
    %p124 = scmp.eq.s32.totalorder %s18, 1
    %p125 = por %p123, %p124
    %p126 = scmp.ne.s32.totalorder %s115, %s116
    %p127 = scmp.eq.s32.totalorder %s18, 0
    %p128 = por %p126, %p127
    %p129 = scmp.ne.s32.totalorder %s115, %s116
    %p130 = scmp.eq.s32.totalorder %s19, 1
    %p131 = por %p129, %p130
    %p133 = scmp.ne.s32.totalorder %s116, %s132
    %p134 = scmp.eq.s32.totalorder %s19, 0
    %p135 = por %p133, %p134
    %s136 = ssub.s32 %s13, %s20
    %p137 = scmp.eq.s32.totalorder %s136, 0
    %s139 = sadd.s32 %s138, 1
    %s140 = scalar_select %p137, %s138, %s139
    %p143 = pneg %p137
    %p144 = scmp.eq.s32.totalorder %s13, 1
    %p145 = por %p143, %p144
    %p146 = scmp.ne.s32.totalorder %s138, %s141
    %p147 = scmp.eq.s32.totalorder %s13, 0
    %p148 = por %p146, %p147
    %p149 = scmp.ne.s32.totalorder %s138, %s141
    %p150 = scmp.eq.s32.totalorder %s18, 1
    %p151 = por %p149, %p150
    %p152 = scmp.ne.s32.totalorder %s141, %s142
    %p153 = scmp.eq.s32.totalorder %s18, 0
    %p154 = por %p152, %p153
    %p155 = scmp.ne.s32.totalorder %s141, %s142
    %p156 = scmp.eq.s32.totalorder %s19, 1
    %p157 = por %p155, %p156
    %p159 = scmp.ne.s32.totalorder %s142, %s158
    %p160 = scmp.eq.s32.totalorder %s19, 0
    %p161 = por %p159, %p160
    %s162 = ssub.s32 %s13, %s20
    %p163 = scmp.eq.s32.totalorder %s162, 0
    %s165 = sadd.s32 %s164, 1
    %s166 = scalar_select %p163, %s164, %s165
    %p169 = pneg %p163
    %p170 = scmp.eq.s32.totalorder %s13, 1
    %p171 = por %p169, %p170
    %p172 = scmp.ne.s32.totalorder %s164, %s167
    %p173 = scmp.eq.s32.totalorder %s13, 0
    %p174 = por %p172, %p173
    %p175 = scmp.ne.s32.totalorder %s164, %s167
    %p176 = scmp.eq.s32.totalorder %s18, 1
    %p177 = por %p175, %p176
    %p178 = scmp.ne.s32.totalorder %s167, %s168
    %p179 = scmp.eq.s32.totalorder %s18, 0
    %p180 = por %p178, %p179
    %p181 = scmp.ne.s32.totalorder %s167, %s168
    %p182 = scmp.eq.s32.totalorder %s19, 1
    %p183 = por %p181, %p182
    %p185 = scmp.ne.s32.totalorder %s168, %s184
    %p186 = scmp.eq.s32.totalorder %s19, 0
    %p187 = por %p185, %p186
    %p188 = scmp.le.s32.totalorder 1, %s13
    %p189 = scmp.lt.s32.totalorder %s13, 3
    %p190 = pnand %p188, %p189
    %p191 = pneg %p190
    // Predicated region
    $region9: #{aa_kernel_forward.8} parent=5 // pred_check
      _
    $region10: #{aa_kernel_forward.8} parent=5 // pred_check_branch
      %193 = sbr.rel (%p190) target = $region12
    $region11: #{aa_kernel_forward.8} parent=5 // pred_region
      %s194 = ssub.s32 %s13, 1
      // Predicated region
      $region13: #{aa_kernel_forward.8} parent=11 // pred_check
        %p195 = pneg %p34
      $region14: #{aa_kernel_forward.8} parent=11 // pred_check_branch
        %197 = sbr.rel (%p195) target = $region16
      $region15: #{aa_kernel_forward.8} parent=11 // pred_region
        _
      $region16: #{aa_kernel_forward.8} parent=11 // pred_fallthru
        _
      // Predicated region
      $region17: #{aa_kernel_forward.8} parent=11 // pred_check
        %p198 = pneg %p55
      $region18: #{aa_kernel_forward.8} parent=11 // pred_check_branch
        %200 = sbr.rel (%p198) target = $region20
      $region19: #{aa_kernel_forward.8} parent=11 // pred_region
        _
      $region20: #{aa_kernel_forward.8} parent=11 // pred_fallthru
        _
      // Predicated region
      $region21: #{aa_kernel_forward.8} parent=11 // pred_check
        %p201 = pneg %p76
      $region22: #{aa_kernel_forward.8} parent=11 // pred_check_branch
        %203 = sbr.rel (%p201) target = $region24
      $region23: #{aa_kernel_forward.8} parent=11 // pred_region
        _
      $region24: #{aa_kernel_forward.8} parent=11 // pred_fallthru
        _
    $region12: #{aa_kernel_forward.8} parent=5 // pred_fallthru
      _
    %p204 = scmp.lt.s32.totalorder %s13, 2
    // Predicated region
    $region25: #{aa_kernel_forward.8} parent=5 // pred_check
      %p205 = pneg %p204
    $region26: #{aa_kernel_forward.8} parent=5 // pred_check_branch
      %207 = sbr.rel (%p205) target = $region28
    $region27: #{aa_kernel_forward.8} parent=5 // pred_region
      // Predicated region
      $region29: #{aa_kernel_forward.8} parent=27 // pred_check
        %p208 = pneg %p96
      $region30: #{aa_kernel_forward.8} parent=27 // pred_check_branch
        %210 = sbr.rel (%p208) target = $region32
      $region31: #{aa_kernel_forward.8} parent=27 // pred_region
        %p211 = scmp.lt.s32.totalorder %s13, 1
        %s212 = scalar_select %p211, %s13, 1
        %s213 = smul.addr %s212, 2
        %s214 = smul.addr %s213, 8
        %s215 = scalar_lea.vmem %s3, %s214
      $region32: #{aa_kernel_forward.8} parent=27 // pred_fallthru
        _
    $region28: #{aa_kernel_forward.8} parent=5 // pred_fallthru
      _
    %p216 = scmp.le.s32.totalorder 1, %s13
    %p217 = scmp.lt.s32.totalorder %s13, 3
    %p218 = pnand %p216, %p217
    %p219 = pneg %p218
    // Predicated region
    $region33: #{aa_kernel_forward.8} parent=5 // pred_check
      _
    $region34: #{aa_kernel_forward.8} parent=5 // pred_check_branch
      %221 = sbr.rel (%p218) target = $region36
    $region35: #{aa_kernel_forward.8} parent=5 // pred_region
      %s222 = ssub.s32 %s13, 1
      %p223 = pneg %p34
      %p224 = pneg %p31
      %p225 = pneg %p55
      %p226 = pneg %p52
      %p227 = pneg %p76
      %p228 = pneg %p73
      %p229 = scmp.lt.s32.totalorder %s18, 1
      %s230 = scalar_select %p229, %s18, 1
      %s231 = smul.addr %s230, 2
      %s232 = smul.addr %s231, 8
      %s233 = scalar_lea.vmem %s3, %s232
      %p234 = pneg %p102
      %p235 = pneg %p99
      %p236 = pneg %p128
      %p237 = pneg %p125
      %p238 = scmp.lt.s32.totalorder %s18, 1
      %s239 = scalar_select %p238, %s18, 1
      %s240 = smul.addr %s239, 2
      %s241 = scalar_lea.vmem %s4, %s240
      %p242 = pneg %p154
      %p243 = pneg %p151
      %p244 = scmp.lt.s32.totalorder %s18, 1
      %s245 = scalar_select %p244, %s18, 1
      %s246 = smul.addr %s245, 2
      %s247 = scalar_lea.vmem %s5, %s246
      %p248 = pneg %p180
      %p249 = pneg %p177
      %p250 = scmp.lt.s32.totalorder %s18, 1
      %s251 = scalar_select %p250, %s18, 1
      %s252 = smul.addr %s251, 2
      %s253 = smul.addr %s252, 8
      %s254 = scalar_lea.vmem %s6, %s253
      %p255 = scmp.lt.s32.totalorder %s18, 1
      %s256 = scalar_select %p255, %s18, 1
      %s257 = smul.addr %s256, 2
      %s258 = smul.addr %s257, 8
      %s259 = scalar_lea.vmem %s3, %s258
      %p260 = scmp.lt.s32.totalorder %s18, 1
      %s261 = scalar_select %p260, %s18, 1
      %s262 = smul.addr %s261, 2
      %s263 = scalar_lea.vmem %s4, %s262
      %p264 = scmp.lt.s32.totalorder %s18, 1
      %s265 = scalar_select %p264, %s18, 1
      %s266 = smul.addr %s265, 2
      %s267 = scalar_lea.vmem %s5, %s266
      %p268 = scmp.lt.s32.totalorder %s18, 1
      %s269 = scalar_select %p268, %s18, 1
      %s270 = smul.addr %s269, 2
      %s271 = smul.addr %s270, 8
      %s272 = scalar_lea.vmem %s6, %s271
      %v273 = vld [vmem:[%s259] sm:$0xff]
      %v274 = vld [vmem:[%s259 + $0x8] sm:$0xff]
      %v275 = vld [vmem:[%s0] sm:$0x3]
      %vm276 = vcmask 130048
      %v278 = vsel %vm276, %v275, 0
      %280 = vmatprep.subr.mxu0 0.0
      %281 = vmatpush1.msra.mxu0 0.0
      %282 = vmatprep.subr.mxu0 0.0
      %283 = vmatpush1.msra.mxu0 0.0
      %284 = vmatprep.subr.mxu0 0.0
      %285 = vmatpush1.msra.mxu0 0.0
      %286 = vmatprep.subr.mxu0 0.0
      %287 = vmatpush1.msra.mxu0 0.0
      %288 = vmatprep.subr.mxu0 0.0
      %289 = vmatpush1.msra.mxu0 0.0
      %290 = vmatprep.subr.mxu0 0.0
      %291 = vmatpush1.msra.mxu0 0.0
      %292 = vmatprep.subr.mxu0 0.0
      %293 = vmatpush1.msra.mxu0 0.0
      %294 = vmatprep.subr.mxu0 0.0
      %295 = vmatpush1.msra.mxu0 0.0
      %296 = vmatprep.subr.mxu0 0.0
      %297 = vmatpush1.msra.mxu0 0.0
      %298 = vmatprep.subr.mxu0 0.0
      %299 = vmatpush1.msra.mxu0 0.0
      %300 = vmatprep.subr.mxu0 0.0
      %301 = vmatpush1.msra.mxu0 0.0
      %302 = vmatprep.subr.mxu0 0.0
      %303 = vmatpush1.msra.mxu0 0.0
      %304 = vmatprep.subr.mxu0 0.0
      %305 = vmatpush1.msra.mxu0 0.0
      %306 = vmatprep.subr.mxu0 0.0
      %307 = vmatpush1.msra.mxu0 0.0
      %308 = vmatprep.subr.mxu0 0.0
      %309 = vmatpush1.msra.mxu0 %v274
      %310 = vmatprep.subr.mxu0 0.0
      %311 = vmatpush1.msra.mxu0 %v273
      %312 = vmatprep.subr.mxu0 0.0
      %313 = vmatpush2.msra.mxu0 0.0
      %314 = vmatprep.subr.mxu0 0.0
      %315 = vmatpush2.msra.mxu0 0.0
      %316 = vmatprep.subr.mxu0 0.0
      %317 = vmatpush2.msra.mxu0 0.0
      %318 = vmatprep.subr.mxu0 0.0
      %319 = vmatpush2.msra.mxu0 0.0
      %320 = vmatprep.subr.mxu0 0.0
      %321 = vmatpush2.msra.mxu0 0.0
      %322 = vmatprep.subr.mxu0 0.0
      %323 = vmatpush2.msra.mxu0 0.0
      %324 = vmatprep.subr.mxu0 0.0
      %325 = vmatpush2.msra.mxu0 0.0
      %326 = vmatprep.subr.mxu0 0.0
      %327 = vmatpush2.msra.mxu0 0.0
      %328 = vmatprep.subr.mxu0 0.0
      %329 = vmatpush2.msra.mxu0 0.0
      %330 = vmatprep.subr.mxu0 0.0
      %331 = vmatpush2.msra.mxu0 0.0
      %332 = vmatprep.subr.mxu0 0.0
      %333 = vmatpush2.msra.mxu0 0.0
      %334 = vmatprep.subr.mxu0 0.0
      %335 = vmatpush2.msra.mxu0 0.0
      %336 = vmatprep.subr.mxu0 0.0
      %337 = vmatpush2.msra.mxu0 0.0
      %338 = vmatprep.subr.mxu0 0.0
      %339 = vmatpush2.msra.mxu0 0.0
      %340 = vmatprep.subr.mxu0 0.0
      %341 = vmatpush2.msra.mxu0 0.0
      %342 = vmatprep.subr.mxu0 0.0
      %343 = vmatpush2.msra.mxu0 0.0
      %344 = vmatprep.mubr.f32.mxu0 0.0
      %345 = vmatmul.mubr.f32.gmra.mxu0 %v278
      %v346 = vpop.f32.mrf.mxu0
      %v347 = vadd.f32 0.0, %v346
      %v348 = vpop.f32.mrf.mxu0
      %349 = vdwg.mxu0
      %350 = vst [vmem:[%s263] sm:$0x3] %v347
      %v351 = vld [vmem:[%s1] sm:$0x3]
      %v353 = vsel %vm276, %v351, 0
      %355 = vmatprep.subr.mxu0 0.0
      %356 = vmatpush1.msra.mxu0 0.0
      %357 = vmatprep.subr.mxu0 0.0
      %358 = vmatpush1.msra.mxu0 0.0
      %359 = vmatprep.subr.mxu0 0.0
      %360 = vmatpush1.msra.mxu0 0.0
      %361 = vmatprep.subr.mxu0 0.0
      %362 = vmatpush1.msra.mxu0 0.0
      %363 = vmatprep.subr.mxu0 0.0
      %364 = vmatpush1.msra.mxu0 0.0
      %365 = vmatprep.subr.mxu0 0.0
      %366 = vmatpush1.msra.mxu0 0.0
      %367 = vmatprep.subr.mxu0 0.0
      %368 = vmatpush1.msra.mxu0 0.0
      %369 = vmatprep.subr.mxu0 0.0
      %370 = vmatpush1.msra.mxu0 0.0
      %371 = vmatprep.subr.mxu0 0.0
      %372 = vmatpush1.msra.mxu0 0.0
      %373 = vmatprep.subr.mxu0 0.0
      %374 = vmatpush1.msra.mxu0 0.0
      %375 = vmatprep.subr.mxu0 0.0
      %376 = vmatpush1.msra.mxu0 0.0
      %377 = vmatprep.subr.mxu0 0.0
      %378 = vmatpush1.msra.mxu0 0.0
      %379 = vmatprep.subr.mxu0 0.0
      %380 = vmatpush1.msra.mxu0 0.0
      %381 = vmatprep.subr.mxu0 0.0
      %382 = vmatpush1.msra.mxu0 0.0
      %383 = vmatprep.subr.mxu0 0.0
      %384 = vmatpush1.msra.mxu0 %v274
      %385 = vmatprep.subr.mxu0 0.0
      %386 = vmatpush1.msra.mxu0 %v273
      %387 = vmatprep.subr.mxu0 0.0
      %388 = vmatpush2.msra.mxu0 0.0
      %389 = vmatprep.subr.mxu0 0.0
      %390 = vmatpush2.msra.mxu0 0.0
      %391 = vmatprep.subr.mxu0 0.0
      %392 = vmatpush2.msra.mxu0 0.0
      %393 = vmatprep.subr.mxu0 0.0
      %394 = vmatpush2.msra.mxu0 0.0
      %395 = vmatprep.subr.mxu0 0.0
      %396 = vmatpush2.msra.mxu0 0.0
      %397 = vmatprep.subr.mxu0 0.0
      %398 = vmatpush2.msra.mxu0 0.0
      %399 = vmatprep.subr.mxu0 0.0
      %400 = vmatpush2.msra.mxu0 0.0
      %401 = vmatprep.subr.mxu0 0.0
      %402 = vmatpush2.msra.mxu0 0.0
      %403 = vmatprep.subr.mxu0 0.0
      %404 = vmatpush2.msra.mxu0 0.0
      %405 = vmatprep.subr.mxu0 0.0
      %406 = vmatpush2.msra.mxu0 0.0
      %407 = vmatprep.subr.mxu0 0.0
      %408 = vmatpush2.msra.mxu0 0.0
      %409 = vmatprep.subr.mxu0 0.0
      %410 = vmatpush2.msra.mxu0 0.0
      %411 = vmatprep.subr.mxu0 0.0
      %412 = vmatpush2.msra.mxu0 0.0
      %413 = vmatprep.subr.mxu0 0.0
      %414 = vmatpush2.msra.mxu0 0.0
      %415 = vmatprep.subr.mxu0 0.0
      %416 = vmatpush2.msra.mxu0 0.0
      %417 = vmatprep.subr.mxu0 0.0
      %418 = vmatpush2.msra.mxu0 0.0
      %419 = vmatprep.mubr.f32.mxu0 0.0
      %420 = vmatmul.mubr.f32.gmra.mxu0 %v353
      %v421 = vpop.f32.mrf.mxu0
      %v422 = vadd.f32 0.0, %v421
      %v423 = vpop.f32.mrf.mxu0
      %424 = vdwg.mxu0
      %425 = vst [vmem:[%s267] sm:$0x3] %v422
      %v426 = vld [vmem:[%s2] sm:$0xff]
      %v427 = vld [vmem:[%s2 + $0x8] sm:$0xff]
      %v429 = vsel %vm276, %v426, 0
      %v432 = vsel %vm276, %v427, 0
      %434 = vmatprep.subr.mxu0 0.0
      %435 = vmatpush1.msra.mxu0 0.0
      %436 = vmatprep.subr.mxu0 0.0
      %437 = vmatpush1.msra.mxu0 0.0
      %438 = vmatprep.subr.mxu0 0.0
      %439 = vmatpush1.msra.mxu0 0.0
      %440 = vmatprep.subr.mxu0 0.0
      %441 = vmatpush1.msra.mxu0 0.0
      %442 = vmatprep.subr.mxu0 0.0
      %443 = vmatpush1.msra.mxu0 0.0
      %444 = vmatprep.subr.mxu0 0.0
      %445 = vmatpush1.msra.mxu0 0.0
      %446 = vmatprep.subr.mxu0 0.0
      %447 = vmatpush1.msra.mxu0 0.0
      %448 = vmatprep.subr.mxu0 0.0
      %449 = vmatpush1.msra.mxu0 0.0
      %450 = vmatprep.subr.mxu0 0.0
      %451 = vmatpush1.msra.mxu0 0.0
      %452 = vmatprep.subr.mxu0 0.0
      %453 = vmatpush1.msra.mxu0 0.0
      %454 = vmatprep.subr.mxu0 0.0
      %455 = vmatpush1.msra.mxu0 0.0
      %456 = vmatprep.subr.mxu0 0.0
      %457 = vmatpush1.msra.mxu0 0.0
      %458 = vmatprep.subr.mxu0 0.0
      %459 = vmatpush1.msra.mxu0 0.0
      %460 = vmatprep.subr.mxu0 0.0
      %461 = vmatpush1.msra.mxu0 0.0
      %462 = vmatprep.subr.mxu0 0.0
      %463 = vmatpush1.msra.mxu0 %v274
      %464 = vmatprep.subr.mxu0 0.0
      %465 = vmatpush1.msra.mxu0 %v273
      %466 = vmatprep.subr.mxu0 0.0
      %467 = vmatpush2.msra.mxu0 0.0
      %468 = vmatprep.subr.mxu0 0.0
      %469 = vmatpush2.msra.mxu0 0.0
      %470 = vmatprep.subr.mxu0 0.0
      %471 = vmatpush2.msra.mxu0 0.0
      %472 = vmatprep.subr.mxu0 0.0
      %473 = vmatpush2.msra.mxu0 0.0
      %474 = vmatprep.subr.mxu0 0.0
      %475 = vmatpush2.msra.mxu0 0.0
      %476 = vmatprep.subr.mxu0 0.0
      %477 = vmatpush2.msra.mxu0 0.0
      %478 = vmatprep.subr.mxu0 0.0
      %479 = vmatpush2.msra.mxu0 0.0
      %480 = vmatprep.subr.mxu0 0.0
      %481 = vmatpush2.msra.mxu0 0.0
      %482 = vmatprep.subr.mxu0 0.0
      %483 = vmatpush2.msra.mxu0 0.0
      %484 = vmatprep.subr.mxu0 0.0
      %485 = vmatpush2.msra.mxu0 0.0
      %486 = vmatprep.subr.mxu0 0.0
      %487 = vmatpush2.msra.mxu0 0.0
      %488 = vmatprep.subr.mxu0 0.0
      %489 = vmatpush2.msra.mxu0 0.0
      %490 = vmatprep.subr.mxu0 0.0
      %491 = vmatpush2.msra.mxu0 0.0
      %492 = vmatprep.subr.mxu0 0.0
      %493 = vmatpush2.msra.mxu0 0.0
      %494 = vmatprep.subr.mxu0 0.0
      %495 = vmatpush2.msra.mxu0 0.0
      %496 = vmatprep.subr.mxu0 0.0
      %497 = vmatpush2.msra.mxu0 0.0
      %498 = vmatprep.mubr.f32.mxu0 0.0
      %499 = vmatmul.mubr.f32.gmra.mxu0 %v429
      %v500 = vpop.f32.mrf.mxu0
      %v501 = vadd.f32 0.0, %v500
      %v502 = vpop.f32.mrf.mxu0
      %503 = vmatprep.mubr.f32.mxu0 0.0
      %504 = vmatmul.mubr.f32.gmra.mxu0 %v432
      %v505 = vpop.f32.mrf.mxu0
      %v506 = vadd.f32 0.0, %v505
      %v507 = vpop.f32.mrf.mxu0
      %508 = vdwg.mxu0
      %509 = vst [vmem:[%s272] sm:$0xff] %v501
      %510 = vst [vmem:[%s272 + $0x8] sm:$0xff] %v506
      %p511 = scmp.lt.s32.totalorder %s18, 1
      %s512 = scalar_select %p511, %s18, 1
      %s513 = smul.addr %s512, 2
      %s514 = scalar_lea.vmem %s4, %s513
      %p515 = scmp.lt.s32.totalorder %s18, 1
      %s516 = scalar_select %p515, %s18, 1
      %s517 = smul.addr %s516, 2
      %s518 = scalar_lea.vmem %s5, %s517
      %p519 = scmp.lt.s32.totalorder %s18, 1
      %s520 = scalar_select %p519, %s18, 1
      %s521 = smul.addr %s520, 2
      %s522 = smul.addr %s521, 8
      %s523 = scalar_lea.vmem %s6, %s522
      // Predicated region
      $region37: #{aa_kernel_forward.8} parent=35 // pred_check
        %p524 = pneg %p125
      $region38: #{aa_kernel_forward.8} parent=35 // pred_check_branch
        %526 = sbr.rel (%p524) target = $region40
      $region39: #{aa_kernel_forward.8} parent=35 // pred_region
        _
      $region40: #{aa_kernel_forward.8} parent=35 // pred_fallthru
        _
      // Predicated region
      $region41: #{aa_kernel_forward.8} parent=35 // pred_check
        %p527 = pneg %p151
      $region42: #{aa_kernel_forward.8} parent=35 // pred_check_branch
        %529 = sbr.rel (%p527) target = $region44
      $region43: #{aa_kernel_forward.8} parent=35 // pred_region
        _
      $region44: #{aa_kernel_forward.8} parent=35 // pred_fallthru
        _
      // Predicated region
      $region45: #{aa_kernel_forward.8} parent=35 // pred_check
        %p530 = pneg %p177
      $region46: #{aa_kernel_forward.8} parent=35 // pred_check_branch
        %532 = sbr.rel (%p530) target = $region48
      $region47: #{aa_kernel_forward.8} parent=35 // pred_region
        _
      $region48: #{aa_kernel_forward.8} parent=35 // pred_fallthru
        _
    $region36: #{aa_kernel_forward.8} parent=5 // pred_fallthru
      _
    %p533 = scmp.le.s32.totalorder 2, %s13
    // Predicated region
    $region49: #{aa_kernel_forward.8} parent=5 // pred_check
      %p534 = pneg %p533
    $region50: #{aa_kernel_forward.8} parent=5 // pred_check_branch
      %536 = sbr.rel (%p534) target = $region52
    $region51: #{aa_kernel_forward.8} parent=5 // pred_region
      %s537 = ssub.s32 %s13, 2
      // Predicated region
      $region53: #{aa_kernel_forward.8} parent=51 // pred_check
        %p538 = pneg %p131
      $region54: #{aa_kernel_forward.8} parent=51 // pred_check_branch
        %540 = sbr.rel (%p538) target = $region56
      $region55: #{aa_kernel_forward.8} parent=51 // pred_region
        %p541 = scmp.lt.s32.totalorder %s19, 1
        %s542 = scalar_select %p541, %s19, 1
        %s543 = smul.addr %s542, 2
        %s544 = scalar_lea.vmem %s4, %s543
      $region56: #{aa_kernel_forward.8} parent=51 // pred_fallthru
        _
      // Predicated region
      $region57: #{aa_kernel_forward.8} parent=51 // pred_check
        %p545 = pneg %p157
      $region58: #{aa_kernel_forward.8} parent=51 // pred_check_branch
        %547 = sbr.rel (%p545) target = $region60
      $region59: #{aa_kernel_forward.8} parent=51 // pred_region
        %p548 = scmp.lt.s32.totalorder %s19, 1
        %s549 = scalar_select %p548, %s19, 1
        %s550 = smul.addr %s549, 2
        %s551 = scalar_lea.vmem %s5, %s550
      $region60: #{aa_kernel_forward.8} parent=51 // pred_fallthru
        _
      // Predicated region
      $region61: #{aa_kernel_forward.8} parent=51 // pred_check
        %p552 = pneg %p183
      $region62: #{aa_kernel_forward.8} parent=51 // pred_check_branch
        %554 = sbr.rel (%p552) target = $region64
      $region63: #{aa_kernel_forward.8} parent=51 // pred_region
        %p555 = scmp.lt.s32.totalorder %s19, 1
        %s556 = scalar_select %p555, %s19, 1
        %s557 = smul.addr %s556, 2
        %s558 = smul.addr %s557, 8
        %s559 = scalar_lea.vmem %s6, %s558
      $region64: #{aa_kernel_forward.8} parent=51 // pred_fallthru
        _
    $region52: #{aa_kernel_forward.8} parent=5 // pred_fallthru
      _
  $region6: #{aa_kernel_forward.8} parent=0 // loop_footer
    %s17 = sadd.s32 1, %s13
  $region7: #{aa_kernel_forward.8} parent=0 // loop_footer_branch
    %12 = sbr.rel target = $region3
  $region8: #{aa_kernel_forward.8} parent=0 // loop_exit
    _

// kernel: aa_kernel_forward.9
$region0: #{aa_kernel_forward.9}
  #allocation0 [shape = 'u32[]', space=smem, size = 0x4, offset = 0x4, fixed_abs, tag = 'smem constant byte address 0x4 - core index']
  #allocation1 [shape = 'u32[144,128]{1,0:T(1,128)}', space=vmem, size = 0x12000, scoped, tag = 'internal scratch']
  %s0 = inlined_call_operand.vmem [shape: f32[2,16,16], index: 0, kind: input, shape index: {}]
  %s1 = inlined_call_operand.vmem [shape: f32[2,16,16], index: 1, kind: input, shape index: {}]
  %s2 = inlined_call_operand.vmem [shape: f32[2,128,16], index: 2, kind: input, shape index: {}]
  %s3 = inlined_call_operand.vmem [shape: f32[2,128,16], index: 3, kind: input, shape index: {}]
  %s4 = inlined_call_operand.vmem [shape: f32[2,128,16], index: 4, kind: output, shape index: {}]
  %s5 = sld [smem:[#allocation0]]
  $region49: #{aa_kernel_forward.9} parent=0
    _
  %s7 = ssub.s32 1, %s5
  %s8 = scalar_select 0, %s7, %s5
  loop: start=0, step=1, limit=4
  $region2: #{aa_kernel_forward.9} parent=0 // loop_pre_header
    _
  $region3: #{aa_kernel_forward.9} parent=0 // loop_header
    %s10 = sphi 0, %s14
    %p11 = scmp.ge.s32.totalorder %s10, 4
    %s20 = sphi 0, %s22
    %s23 = sphi 0, %s20
    %s24 = sphi 0, %s23
    %s40 = sphi 0, %s24
    %s46 = sphi 0, %s48
    %s49 = sphi 0, %s46
    %s50 = sphi 0, %s49
    %s66 = sphi 0, %s50
    %s72 = sphi 0, %s74
    %s75 = sphi 0, %s72
    %s76 = sphi 0, %s75
    %s92 = sphi 0, %s76
    %s98 = sphi 0, %s100
    %s101 = sphi 0, %s98
    %s102 = sphi 0, %s101
    %s118 = sphi 0, %s102
    %s124 = sphi 0, %s126
    %s127 = sphi 0, %s124
    %s128 = sphi 0, %s127
    %s144 = sphi 0, %s128
  $region4: #{aa_kernel_forward.9} parent=0 // loop_header_branch
    %13 = sbr.rel (%p11) target = $region8
  $region5: #{aa_kernel_forward.9} parent=0 // loop_body
    %s15 = ssub.s32 %s10, 1
    %s16 = ssub.s32 %s10, 2
    %s17 = sadd.s32 %s10, 1
    %s18 = ssub.s32 %s10, %s17
    %p19 = scmp.eq.s32.totalorder %s18, 0
    %s21 = sadd.s32 %s20, 1
    %s22 = scalar_select %p19, %s20, %s21
    %p25 = pneg %p19
    %p26 = scmp.eq.s32.totalorder %s10, 1
    %p27 = por %p25, %p26
    %p28 = scmp.ne.s32.totalorder %s20, %s23
    %p29 = scmp.eq.s32.totalorder %s10, 0
    %p30 = por %p28, %p29
    %p31 = scmp.ne.s32.totalorder %s20, %s23
    %p32 = scmp.eq.s32.totalorder %s15, 1
    %p33 = por %p31, %p32
    %p34 = scmp.ne.s32.totalorder %s23, %s24
    %p35 = scmp.eq.s32.totalorder %s15, 0
    %p36 = por %p34, %p35
    %p37 = scmp.ne.s32.totalorder %s23, %s24
    %p38 = scmp.eq.s32.totalorder %s16, 1
    %p39 = por %p37, %p38
    %p41 = scmp.ne.s32.totalorder %s24, %s40
    %p42 = scmp.eq.s32.totalorder %s16, 0
    %p43 = por %p41, %p42
    %s44 = ssub.s32 %s10, %s17
    %p45 = scmp.eq.s32.totalorder %s44, 0
    %s47 = sadd.s32 %s46, 1
    %s48 = scalar_select %p45, %s46, %s47
    %p51 = pneg %p45
    %p52 = scmp.eq.s32.totalorder %s10, 1
    %p53 = por %p51, %p52
    %p54 = scmp.ne.s32.totalorder %s46, %s49
    %p55 = scmp.eq.s32.totalorder %s10, 0
    %p56 = por %p54, %p55
    %p57 = scmp.ne.s32.totalorder %s46, %s49
    %p58 = scmp.eq.s32.totalorder %s15, 1
    %p59 = por %p57, %p58
    %p60 = scmp.ne.s32.totalorder %s49, %s50
    %p61 = scmp.eq.s32.totalorder %s15, 0
    %p62 = por %p60, %p61
    %p63 = scmp.ne.s32.totalorder %s49, %s50
    %p64 = scmp.eq.s32.totalorder %s16, 1
    %p65 = por %p63, %p64
    %p67 = scmp.ne.s32.totalorder %s50, %s66
    %p68 = scmp.eq.s32.totalorder %s16, 0
    %p69 = por %p67, %p68
    %s70 = ssub.s32 %s10, %s17
    %p71 = scmp.eq.s32.totalorder %s70, 0
    %s73 = sadd.s32 %s72, 1
    %s74 = scalar_select %p71, %s72, %s73
    %p77 = pneg %p71
    %p78 = scmp.eq.s32.totalorder %s10, 1
    %p79 = por %p77, %p78
    %p80 = scmp.ne.s32.totalorder %s72, %s75
    %p81 = scmp.eq.s32.totalorder %s10, 0
    %p82 = por %p80, %p81
    %p83 = scmp.ne.s32.totalorder %s72, %s75
    %p84 = scmp.eq.s32.totalorder %s15, 1
    %p85 = por %p83, %p84
    %p86 = scmp.ne.s32.totalorder %s75, %s76
    %p87 = scmp.eq.s32.totalorder %s15, 0
    %p88 = por %p86, %p87
    %p89 = scmp.ne.s32.totalorder %s75, %s76
    %p90 = scmp.eq.s32.totalorder %s16, 1
    %p91 = por %p89, %p90
    %p93 = scmp.ne.s32.totalorder %s76, %s92
    %p94 = scmp.eq.s32.totalorder %s16, 0
    %p95 = por %p93, %p94
    %s96 = ssub.s32 %s10, %s17
    %p97 = scmp.eq.s32.totalorder %s96, 0
    %s99 = sadd.s32 %s98, 1
    %s100 = scalar_select %p97, %s98, %s99
    %p103 = pneg %p97
    %p104 = scmp.eq.s32.totalorder %s10, 1
    %p105 = por %p103, %p104
    %p106 = scmp.ne.s32.totalorder %s98, %s101
    %p107 = scmp.eq.s32.totalorder %s10, 0
    %p108 = por %p106, %p107
    %p109 = scmp.ne.s32.totalorder %s98, %s101
    %p110 = scmp.eq.s32.totalorder %s15, 1
    %p111 = por %p109, %p110
    %p112 = scmp.ne.s32.totalorder %s101, %s102
    %p113 = scmp.eq.s32.totalorder %s15, 0
    %p114 = por %p112, %p113
    %p115 = scmp.ne.s32.totalorder %s101, %s102
    %p116 = scmp.eq.s32.totalorder %s16, 1
    %p117 = por %p115, %p116
    %p119 = scmp.ne.s32.totalorder %s102, %s118
    %p120 = scmp.eq.s32.totalorder %s16, 0
    %p121 = por %p119, %p120
    %s122 = ssub.s32 %s10, %s17
    %p123 = scmp.eq.s32.totalorder %s122, 0
    %s125 = sadd.s32 %s124, 1
    %s126 = scalar_select %p123, %s124, %s125
    %p129 = pneg %p123
    %p130 = scmp.eq.s32.totalorder %s10, 1
    %p131 = por %p129, %p130
    %p132 = scmp.ne.s32.totalorder %s124, %s127
    %p133 = scmp.eq.s32.totalorder %s10, 0
    %p134 = por %p132, %p133
    %p135 = scmp.ne.s32.totalorder %s124, %s127
    %p136 = scmp.eq.s32.totalorder %s15, 1
    %p137 = por %p135, %p136
    %p138 = scmp.ne.s32.totalorder %s127, %s128
    %p139 = scmp.eq.s32.totalorder %s15, 0
    %p140 = por %p138, %p139
    %p141 = scmp.ne.s32.totalorder %s127, %s128
    %p142 = scmp.eq.s32.totalorder %s16, 1
    %p143 = por %p141, %p142
    %p145 = scmp.ne.s32.totalorder %s128, %s144
    %p146 = scmp.eq.s32.totalorder %s16, 0
    %p147 = por %p145, %p146
    %p148 = scmp.le.s32.totalorder 1, %s10
    %p149 = scmp.lt.s32.totalorder %s10, 3
    %p150 = pnand %p148, %p149
    %p151 = pneg %p150
    // Predicated region
    $region9: #{aa_kernel_forward.9} parent=5 // pred_check
      _
    $region10: #{aa_kernel_forward.9} parent=5 // pred_check_branch
      %153 = sbr.rel (%p150) target = $region12
    $region11: #{aa_kernel_forward.9} parent=5 // pred_region
      %s154 = ssub.s32 %s10, 1
    $region12: #{aa_kernel_forward.9} parent=5 // pred_fallthru
      _
    %p155 = scmp.lt.s32.totalorder %s10, 2
    // Predicated region
    $region13: #{aa_kernel_forward.9} parent=5 // pred_check
      %p156 = pneg %p155
    $region14: #{aa_kernel_forward.9} parent=5 // pred_check_branch
      %158 = sbr.rel (%p156) target = $region16
    $region15: #{aa_kernel_forward.9} parent=5 // pred_region
      // Predicated region
      $region17: #{aa_kernel_forward.9} parent=15 // pred_check
        %p159 = pneg %p30
      $region18: #{aa_kernel_forward.9} parent=15 // pred_check_branch
        %161 = sbr.rel (%p159) target = $region20
      $region19: #{aa_kernel_forward.9} parent=15 // pred_region
        %p162 = scmp.lt.s32.totalorder %s10, 1
        %s163 = scalar_select %p162, %s10, 1
        %s164 = smul.addr %s163, 2
        %s165 = smul.addr %s164, 8
        %s166 = scalar_lea.vmem %s0, %s165
      $region20: #{aa_kernel_forward.9} parent=15 // pred_fallthru
        _
      // Predicated region
      $region21: #{aa_kernel_forward.9} parent=15 // pred_check
        %p167 = pneg %p56
      $region22: #{aa_kernel_forward.9} parent=15 // pred_check_branch
        %169 = sbr.rel (%p167) target = $region24
      $region23: #{aa_kernel_forward.9} parent=15 // pred_region
        %p170 = scmp.lt.s32.totalorder %s10, 1
        %s171 = scalar_select %p170, %s10, 1
        %s172 = smul.addr %s171, 2
        %s173 = smul.addr %s172, 8
        %s174 = scalar_lea.vmem %s1, %s173
      $region24: #{aa_kernel_forward.9} parent=15 // pred_fallthru
        _
      // Predicated region
      $region25: #{aa_kernel_forward.9} parent=15 // pred_check
        %p175 = pneg %p82
      $region26: #{aa_kernel_forward.9} parent=15 // pred_check_branch
        %177 = sbr.rel (%p175) target = $region28
      $region27: #{aa_kernel_forward.9} parent=15 // pred_region
        %p178 = scmp.lt.s32.totalorder %s10, 1
        %s179 = scalar_select %p178, %s10, 1
        %s180 = smul.addr %s179, 16
        %s181 = smul.addr %s180, 8
        %s182 = scalar_lea.vmem %s2, %s181
      $region28: #{aa_kernel_forward.9} parent=15 // pred_fallthru
        _
      // Predicated region
      $region29: #{aa_kernel_forward.9} parent=15 // pred_check
        %p183 = pneg %p108
      $region30: #{aa_kernel_forward.9} parent=15 // pred_check_branch
        %185 = sbr.rel (%p183) target = $region32
      $region31: #{aa_kernel_forward.9} parent=15 // pred_region
        %p186 = scmp.lt.s32.totalorder %s10, 1
        %s187 = scalar_select %p186, %s10, 1
        %s188 = smul.addr %s187, 16
        %s189 = smul.addr %s188, 8
        %s190 = scalar_lea.vmem %s3, %s189
      $region32: #{aa_kernel_forward.9} parent=15 // pred_fallthru
        _
    $region16: #{aa_kernel_forward.9} parent=5 // pred_fallthru
      _
    %p191 = scmp.le.s32.totalorder 1, %s10
    %p192 = scmp.lt.s32.totalorder %s10, 3
    %p193 = pnand %p191, %p192
    %p194 = pneg %p193
    // Predicated region
    $region33: #{aa_kernel_forward.9} parent=5 // pred_check
      _
    $region34: #{aa_kernel_forward.9} parent=5 // pred_check_branch
      %196 = sbr.rel (%p193) target = $region36
    $region35: #{aa_kernel_forward.9} parent=5 // pred_region
      %s197 = ssub.s32 %s10, 1
      %p198 = scmp.lt.s32.totalorder %s15, 1
      %s199 = scalar_select %p198, %s15, 1
      %s200 = smul.addr %s199, 2
      %s201 = smul.addr %s200, 8
      %s202 = scalar_lea.vmem %s0, %s201
      %p203 = pneg %p36
      %p204 = pneg %p33
      %p205 = scmp.lt.s32.totalorder %s15, 1
      %s206 = scalar_select %p205, %s15, 1
      %s207 = smul.addr %s206, 2
      %s208 = smul.addr %s207, 8
      %s209 = scalar_lea.vmem %s1, %s208
      %p210 = pneg %p62
      %p211 = pneg %p59
      %p212 = scmp.lt.s32.totalorder %s15, 1
      %s213 = scalar_select %p212, %s15, 1
      %s214 = smul.addr %s213, 16
      %s215 = smul.addr %s214, 8
      %s216 = scalar_lea.vmem %s2, %s215
      %p217 = pneg %p88
      %p218 = pneg %p85
      %p219 = scmp.lt.s32.totalorder %s15, 1
      %s220 = scalar_select %p219, %s15, 1
      %s221 = smul.addr %s220, 16
      %s222 = smul.addr %s221, 8
      %s223 = scalar_lea.vmem %s3, %s222
      %p224 = pneg %p114
      %p225 = pneg %p111
      %p226 = pneg %p140
      %p227 = pneg %p137
      %p228 = scmp.lt.s32.totalorder %s15, 1
      %s229 = scalar_select %p228, %s15, 1
      %s230 = smul.addr %s229, 16
      %s231 = smul.addr %s230, 8
      %s232 = scalar_lea.vmem %s4, %s231
      %p233 = scmp.lt.s32.totalorder %s15, 1
      %s234 = scalar_select %p233, %s15, 1
      %s235 = smul.addr %s234, 2
      %s236 = smul.addr %s235, 8
      %s237 = scalar_lea.vmem %s0, %s236
      %p238 = scmp.lt.s32.totalorder %s15, 1
      %s239 = scalar_select %p238, %s15, 1
      %s240 = smul.addr %s239, 2
      %s241 = smul.addr %s240, 8
      %s242 = scalar_lea.vmem %s1, %s241
      %p243 = scmp.lt.s32.totalorder %s15, 1
      %s244 = scalar_select %p243, %s15, 1
      %s245 = smul.addr %s244, 16
      %s246 = smul.addr %s245, 8
      %s247 = scalar_lea.vmem %s2, %s246
      %p248 = scmp.lt.s32.totalorder %s15, 1
      %s249 = scalar_select %p248, %s15, 1
      %s250 = smul.addr %s249, 16
      %s251 = smul.addr %s250, 8
      %s252 = scalar_lea.vmem %s3, %s251
      %p253 = scmp.lt.s32.totalorder %s15, 1
      %s254 = scalar_select %p253, %s15, 1
      %s255 = smul.addr %s254, 16
      %s256 = smul.addr %s255, 8
      %s257 = scalar_lea.vmem %s4, %s256
      %v258 = vld [vmem:[%s237] sm:$0xff]
      %v259 = vld [vmem:[%s237 + $0x8] sm:$0xff]
      %v260 = vld [vmem:[%s242] sm:$0xff]
      %v261 = vld [vmem:[%s242 + $0x8] sm:$0xff]
      %262 = vxpose.xlu0.b32.start [1/16] %v258, 128
      %263 = vxpose.xlu0.b32.cont [2/16] %v259, 128
      %264 = vxpose.xlu0.b32.cont [3/16] 0.0, 128
      %265 = vxpose.xlu0.b32.cont [4/16] 0.0, 128
      %266 = vxpose.xlu0.b32.cont [5/16] 0.0, 128
      %267 = vxpose.xlu0.b32.cont [6/16] 0.0, 128
      %268 = vxpose.xlu0.b32.cont [7/16] 0.0, 128
      %269 = vxpose.xlu0.b32.cont [8/16] 0.0, 128
      %270 = vxpose.xlu0.b32.cont [9/16] 0.0, 128
      %271 = vxpose.xlu0.b32.cont [10/16] 0.0, 128
      %272 = vxpose.xlu0.b32.cont [11/16] 0.0, 128
      %273 = vxpose.xlu0.b32.cont [12/16] 0.0, 128
      %274 = vxpose.xlu0.b32.cont [13/16] 0.0, 128
      %275 = vxpose.xlu0.b32.cont [14/16] 0.0, 128
      %276 = vxpose.xlu0.b32.cont [15/16] 0.0, 128
      %277 = vxpose.xlu0.b32.end [16/16] 0.0, 128
      %v278 = vpop.trf.xlu0
      %v279 = vpop.trf.xlu0
      %v280 = vpop.trf.xlu0
      %v281 = vpop.trf.xlu0
      %v282 = vpop.trf.xlu0
      %v283 = vpop.trf.xlu0
      %v284 = vpop.trf.xlu0
      %v285 = vpop.trf.xlu0
      %v286 = vpop.trf.xlu0
      %v287 = vpop.trf.xlu0
      %v288 = vpop.trf.xlu0
      %v289 = vpop.trf.xlu0
      %v290 = vpop.trf.xlu0
      %v291 = vpop.trf.xlu0
      %v292 = vpop.trf.xlu0
      %v293 = vpop.trf.xlu0
      %vm294 = vcmask 130048
      %v296 = vsel %vm294, %v278, 0
      %v299 = vsel %vm294, %v279, 0
      %301 = vmatprep.subr.mxu0 0.0
      %302 = vmatpush1.msra.mxu0 0.0
      %303 = vmatprep.subr.mxu0 0.0
      %304 = vmatpush1.msra.mxu0 0.0
      %305 = vmatprep.subr.mxu0 0.0
      %306 = vmatpush1.msra.mxu0 0.0
      %307 = vmatprep.subr.mxu0 0.0
      %308 = vmatpush1.msra.mxu0 0.0
      %309 = vmatprep.subr.mxu0 0.0
      %310 = vmatpush1.msra.mxu0 0.0
      %311 = vmatprep.subr.mxu0 0.0
      %312 = vmatpush1.msra.mxu0 0.0
      %313 = vmatprep.subr.mxu0 0.0
      %314 = vmatpush1.msra.mxu0 0.0
      %315 = vmatprep.subr.mxu0 0.0
      %316 = vmatpush1.msra.mxu0 0.0
      %317 = vmatprep.subr.mxu0 0.0
      %318 = vmatpush1.msra.mxu0 0.0
      %319 = vmatprep.subr.mxu0 0.0
      %320 = vmatpush1.msra.mxu0 0.0
      %321 = vmatprep.subr.mxu0 0.0
      %322 = vmatpush1.msra.mxu0 0.0
      %323 = vmatprep.subr.mxu0 0.0
      %324 = vmatpush1.msra.mxu0 0.0
      %325 = vmatprep.subr.mxu0 0.0
      %326 = vmatpush1.msra.mxu0 0.0
      %327 = vmatprep.subr.mxu0 0.0
      %328 = vmatpush1.msra.mxu0 0.0
      %329 = vmatprep.subr.mxu0 0.0
      %330 = vmatpush1.msra.mxu0 %v261
      %331 = vmatprep.subr.mxu0 0.0
      %332 = vmatpush1.msra.mxu0 %v260
      %333 = vmatprep.subr.mxu0 0.0
      %334 = vmatpush2.msra.mxu0 0.0
      %335 = vmatprep.subr.mxu0 0.0
      %336 = vmatpush2.msra.mxu0 0.0
      %337 = vmatprep.subr.mxu0 0.0
      %338 = vmatpush2.msra.mxu0 0.0
      %339 = vmatprep.subr.mxu0 0.0
      %340 = vmatpush2.msra.mxu0 0.0
      %341 = vmatprep.subr.mxu0 0.0
      %342 = vmatpush2.msra.mxu0 0.0
      %343 = vmatprep.subr.mxu0 0.0
      %344 = vmatpush2.msra.mxu0 0.0
      %345 = vmatprep.subr.mxu0 0.0
      %346 = vmatpush2.msra.mxu0 0.0
      %347 = vmatprep.subr.mxu0 0.0
      %348 = vmatpush2.msra.mxu0 0.0
      %349 = vmatprep.subr.mxu0 0.0
      %350 = vmatpush2.msra.mxu0 0.0
      %351 = vmatprep.subr.mxu0 0.0
      %352 = vmatpush2.msra.mxu0 0.0
      %353 = vmatprep.subr.mxu0 0.0
      %354 = vmatpush2.msra.mxu0 0.0
      %355 = vmatprep.subr.mxu0 0.0
      %356 = vmatpush2.msra.mxu0 0.0
      %357 = vmatprep.subr.mxu0 0.0
      %358 = vmatpush2.msra.mxu0 0.0
      %359 = vmatprep.subr.mxu0 0.0
      %360 = vmatpush2.msra.mxu0 0.0
      %361 = vmatprep.subr.mxu0 0.0
      %362 = vmatpush2.msra.mxu0 0.0
      %363 = vmatprep.subr.mxu0 0.0
      %364 = vmatpush2.msra.mxu0 0.0
      %365 = vmatprep.mubr.f32.mxu0 0.0
      %366 = vmatmul.mubr.f32.gmra.mxu0 %v296
      %v367 = vpop.f32.mrf.mxu0
      %v368 = vadd.f32 0.0, %v367
      %v369 = vpop.f32.mrf.mxu0
      %370 = vmatprep.mubr.f32.mxu0 0.0
      %371 = vmatmul.mubr.f32.gmra.mxu0 %v299
      %v372 = vpop.f32.mrf.mxu0
      %v373 = vadd.f32 0.0, %v372
      %v374 = vpop.f32.mrf.mxu0
      %375 = vdwg.mxu0
      %v376 = vsub.f32 0.0, %v368
      %v377 = vsub.f32 0.0, %v373
      %v378 = vmul.f32 %v376, 1.442695
      %v379 = vpow.pop %v378
      %v380 = vmul.f32 %v377, 1.442695
      %v381 = vpow.pop %v380
      %v382 = vadd.f32 %v379, 1.0
      %v383 = vadd.f32 %v381, 1.0
      %v384 = vrcp.pop %v382
      %v385 = vmul.f32 1.0, %v384
      %v386 = vrcp.pop %v383
      %v387 = vmul.f32 1.0, %v386
      %v388 = vld [vmem:[%s247] sm:$0xff]
      %v389 = vld [vmem:[%s247 + $0x8] sm:$0xff]
      %v390 = vld [vmem:[%s247 + $0x10] sm:$0xff]
      %v391 = vld [vmem:[%s247 + $0x18] sm:$0xff]
      %v392 = vld [vmem:[%s247 + $0x20] sm:$0xff]
      %v393 = vld [vmem:[%s247 + $0x28] sm:$0xff]
      %v394 = vld [vmem:[%s247 + $0x30] sm:$0xff]
      %v395 = vld [vmem:[%s247 + $0x38] sm:$0xff]
      %v396 = vld [vmem:[%s247 + $0x40] sm:$0xff]
      %v397 = vld [vmem:[%s247 + $0x48] sm:$0xff]
      %v398 = vld [vmem:[%s247 + $0x50] sm:$0xff]
      %v399 = vld [vmem:[%s247 + $0x58] sm:$0xff]
      %v400 = vld [vmem:[%s247 + $0x60] sm:$0xff]
      %v401 = vld [vmem:[%s247 + $0x68] sm:$0xff]
      %v402 = vld [vmem:[%s247 + $0x70] sm:$0xff]
      %v403 = vld [vmem:[%s247 + $0x78] sm:$0xff]
      %v404 = vld [vmem:[%s252] sm:$0xff]
      %v405 = vld [vmem:[%s252 + $0x8] sm:$0xff]
      %v406 = vld [vmem:[%s252 + $0x10] sm:$0xff]
      %v407 = vld [vmem:[%s252 + $0x18] sm:$0xff]
      %v408 = vld [vmem:[%s252 + $0x20] sm:$0xff]
      %v409 = vld [vmem:[%s252 + $0x28] sm:$0xff]
      %v410 = vld [vmem:[%s252 + $0x30] sm:$0xff]
      %v411 = vld [vmem:[%s252 + $0x38] sm:$0xff]
      %v412 = vld [vmem:[%s252 + $0x40] sm:$0xff]
      %v413 = vld [vmem:[%s252 + $0x48] sm:$0xff]
      %v414 = vld [vmem:[%s252 + $0x50] sm:$0xff]
      %v415 = vld [vmem:[%s252 + $0x58] sm:$0xff]
      %v416 = vld [vmem:[%s252 + $0x60] sm:$0xff]
      %v417 = vld [vmem:[%s252 + $0x68] sm:$0xff]
      %v418 = vld [vmem:[%s252 + $0x70] sm:$0xff]
      %v419 = vld [vmem:[%s252 + $0x78] sm:$0xff]
      %v421 = vsel %vm294, %v388, 0
      %v424 = vsel %vm294, %v389, 0
      %v427 = vsel %vm294, %v390, 0
      %v430 = vsel %vm294, %v391, 0
      %v433 = vsel %vm294, %v392, 0
      %v436 = vsel %vm294, %v393, 0
      %v439 = vsel %vm294, %v394, 0
      %v442 = vsel %vm294, %v395, 0
      %v445 = vsel %vm294, %v396, 0
      %v448 = vsel %vm294, %v397, 0
      %v451 = vsel %vm294, %v398, 0
      %v454 = vsel %vm294, %v399, 0
      %v457 = vsel %vm294, %v400, 0
      %v460 = vsel %vm294, %v401, 0
      %v463 = vsel %vm294, %v402, 0
      %v466 = vsel %vm294, %v403, 0
      %v469 = vsel %vm294, %v385, 0
      %v472 = vsel %vm294, %v387, 0
      %474 = vmatprep.subr.mxu0 0.0
      %475 = vmatpush1.xpose.msra.mxu0 0.0
      %476 = vmatprep.subr.mxu0 0.0
      %477 = vmatpush1.xpose.msra.mxu0 0.0
      %478 = vmatprep.subr.mxu0 0.0
      %479 = vmatpush1.xpose.msra.mxu0 0.0
      %480 = vmatprep.subr.mxu0 0.0
      %481 = vmatpush1.xpose.msra.mxu0 0.0
      %482 = vmatprep.subr.mxu0 0.0
      %483 = vmatpush1.xpose.msra.mxu0 0.0
      %484 = vmatprep.subr.mxu0 0.0
      %485 = vmatpush1.xpose.msra.mxu0 0.0
      %486 = vmatprep.subr.mxu0 0.0
      %487 = vmatpush1.xpose.msra.mxu0 0.0
      %488 = vmatprep.subr.mxu0 0.0
      %489 = vmatpush1.xpose.msra.mxu0 0.0
      %490 = vmatprep.subr.mxu0 0.0
      %491 = vmatpush1.xpose.msra.mxu0 0.0
      %492 = vmatprep.subr.mxu0 0.0
      %493 = vmatpush1.xpose.msra.mxu0 0.0
      %494 = vmatprep.subr.mxu0 0.0
      %495 = vmatpush1.xpose.msra.mxu0 0.0
      %496 = vmatprep.subr.mxu0 0.0
      %497 = vmatpush1.xpose.msra.mxu0 0.0
      %498 = vmatprep.subr.mxu0 0.0
      %499 = vmatpush1.xpose.msra.mxu0 0.0
      %500 = vmatprep.subr.mxu0 0.0
      %501 = vmatpush1.xpose.msra.mxu0 0.0
      %502 = vmatprep.subr.mxu0 0.0
      %503 = vmatpush1.xpose.msra.mxu0 %v472
      %504 = vmatprep.subr.mxu0 0.0
      %505 = vmatpush1.xpose.msra.mxu0 %v469
      %506 = vmatprep.subr.mxu0 0.0
      %507 = vmatpush2.xpose.msra.mxu0 0.0
      %508 = vmatprep.subr.mxu0 0.0
      %509 = vmatpush2.xpose.msra.mxu0 0.0
      %510 = vmatprep.subr.mxu0 0.0
      %511 = vmatpush2.xpose.msra.mxu0 0.0
      %512 = vmatprep.subr.mxu0 0.0
      %513 = vmatpush2.xpose.msra.mxu0 0.0
      %514 = vmatprep.subr.mxu0 0.0
      %515 = vmatpush2.xpose.msra.mxu0 0.0
      %516 = vmatprep.subr.mxu0 0.0
      %517 = vmatpush2.xpose.msra.mxu0 0.0
      %518 = vmatprep.subr.mxu0 0.0
      %519 = vmatpush2.xpose.msra.mxu0 0.0
      %520 = vmatprep.subr.mxu0 0.0
      %521 = vmatpush2.xpose.msra.mxu0 0.0
      %522 = vmatprep.subr.mxu0 0.0
      %523 = vmatpush2.xpose.msra.mxu0 0.0
      %524 = vmatprep.subr.mxu0 0.0
      %525 = vmatpush2.xpose.msra.mxu0 0.0
      %526 = vmatprep.subr.mxu0 0.0
      %527 = vmatpush2.xpose.msra.mxu0 0.0
      %528 = vmatprep.subr.mxu0 0.0
      %529 = vmatpush2.xpose.msra.mxu0 0.0
      %530 = vmatprep.subr.mxu0 0.0
      %531 = vmatpush2.xpose.msra.mxu0 0.0
      %532 = vmatprep.subr.mxu0 0.0
      %533 = vmatpush2.xpose.msra.mxu0 0.0
      %534 = vmatprep.subr.mxu0 0.0
      %535 = vmatpush2.xpose.msra.mxu0 0.0
      %536 = vmatprep.subr.mxu0 0.0
      %537 = vmatpush2.xpose.msra.mxu0 0.0
      %538 = vmatprep.mubr.f32.mxu0 0.0
      %539 = vmatmul.mubr.f32.gmra.mxu0 %v421
      %v540 = vpop.f32.mrf.mxu0
      %v541 = vadd.f32 %v404, %v540
      %v542 = vpop.f32.mrf.mxu0
      %543 = vmatprep.mubr.f32.mxu0 0.0
      %544 = vmatmul.mubr.f32.gmra.mxu0 %v424
      %v545 = vpop.f32.mrf.mxu0
      %v546 = vadd.f32 %v405, %v545
      %v547 = vpop.f32.mrf.mxu0
      %548 = vmatprep.mubr.f32.mxu0 0.0
      %549 = vmatmul.mubr.f32.gmra.mxu0 %v427
      %v550 = vpop.f32.mrf.mxu0
      %v551 = vadd.f32 %v406, %v550
      %v552 = vpop.f32.mrf.mxu0
      %553 = vmatprep.mubr.f32.mxu0 0.0
      %554 = vmatmul.mubr.f32.gmra.mxu0 %v430
      %v555 = vpop.f32.mrf.mxu0
      %v556 = vadd.f32 %v407, %v555
      %v557 = vpop.f32.mrf.mxu0
      %558 = vmatprep.mubr.f32.mxu0 0.0
      %559 = vmatmul.mubr.f32.gmra.mxu0 %v433
      %v560 = vpop.f32.mrf.mxu0
      %v561 = vadd.f32 %v408, %v560
      %v562 = vpop.f32.mrf.mxu0
      %563 = vmatprep.mubr.f32.mxu0 0.0
      %564 = vmatmul.mubr.f32.gmra.mxu0 %v436
      %v565 = vpop.f32.mrf.mxu0
      %v566 = vadd.f32 %v409, %v565
      %v567 = vpop.f32.mrf.mxu0
      %568 = vmatprep.mubr.f32.mxu0 0.0
      %569 = vmatmul.mubr.f32.gmra.mxu0 %v439
      %v570 = vpop.f32.mrf.mxu0
      %v571 = vadd.f32 %v410, %v570
      %v572 = vpop.f32.mrf.mxu0
      %573 = vmatprep.mubr.f32.mxu0 0.0
      %574 = vmatmul.mubr.f32.gmra.mxu0 %v442
      %v575 = vpop.f32.mrf.mxu0
      %v576 = vadd.f32 %v411, %v575
      %v577 = vpop.f32.mrf.mxu0
      %578 = vmatprep.mubr.f32.mxu0 0.0
      %579 = vmatmul.mubr.f32.gmra.mxu0 %v445
      %v580 = vpop.f32.mrf.mxu0
      %v581 = vadd.f32 %v412, %v580
      %v582 = vpop.f32.mrf.mxu0
      %583 = vmatprep.mubr.f32.mxu0 0.0
      %584 = vmatmul.mubr.f32.gmra.mxu0 %v448
      %v585 = vpop.f32.mrf.mxu0
      %v586 = vadd.f32 %v413, %v585
      %v587 = vpop.f32.mrf.mxu0
      %588 = vmatprep.mubr.f32.mxu0 0.0
      %589 = vmatmul.mubr.f32.gmra.mxu0 %v451
      %v590 = vpop.f32.mrf.mxu0
      %v591 = vadd.f32 %v414, %v590
      %v592 = vpop.f32.mrf.mxu0
      %593 = vmatprep.mubr.f32.mxu0 0.0
      %594 = vmatmul.mubr.f32.gmra.mxu0 %v454
      %v595 = vpop.f32.mrf.mxu0
      %v596 = vadd.f32 %v415, %v595
      %v597 = vpop.f32.mrf.mxu0
      %598 = vmatprep.mubr.f32.mxu0 0.0
      %599 = vmatmul.mubr.f32.gmra.mxu0 %v457
      %v600 = vpop.f32.mrf.mxu0
      %v601 = vadd.f32 %v416, %v600
      %v602 = vpop.f32.mrf.mxu0
      %603 = vmatprep.mubr.f32.mxu0 0.0
      %604 = vmatmul.mubr.f32.gmra.mxu0 %v460
      %v605 = vpop.f32.mrf.mxu0
      %v606 = vadd.f32 %v417, %v605
      %v607 = vpop.f32.mrf.mxu0
      %608 = vmatprep.mubr.f32.mxu0 0.0
      %609 = vmatmul.mubr.f32.gmra.mxu0 %v463
      %v610 = vpop.f32.mrf.mxu0
      %v611 = vadd.f32 %v418, %v610
      %v612 = vpop.f32.mrf.mxu0
      %613 = vmatprep.mubr.f32.mxu0 0.0
      %614 = vmatmul.mubr.f32.gmra.mxu0 %v466
      %v615 = vpop.f32.mrf.mxu0
      %v616 = vadd.f32 %v419, %v615
      %v617 = vpop.f32.mrf.mxu0
      %618 = vdwg.mxu0
      %619 = vst.msk [vmem:[%s257] sm:$0xff] %vm294, %v541
      %620 = vst.msk [vmem:[%s257 + $0x8] sm:$0xff] %vm294, %v546
      %621 = vst.msk [vmem:[%s257 + $0x10] sm:$0xff] %vm294, %v551
      %622 = vst.msk [vmem:[%s257 + $0x18] sm:$0xff] %vm294, %v556
      %623 = vst.msk [vmem:[%s257 + $0x20] sm:$0xff] %vm294, %v561
      %624 = vst.msk [vmem:[%s257 + $0x28] sm:$0xff] %vm294, %v566
      %625 = vst.msk [vmem:[%s257 + $0x30] sm:$0xff] %vm294, %v571
      %626 = vst.msk [vmem:[%s257 + $0x38] sm:$0xff] %vm294, %v576
      %627 = vst.msk [vmem:[%s257 + $0x40] sm:$0xff] %vm294, %v581
      %628 = vst.msk [vmem:[%s257 + $0x48] sm:$0xff] %vm294, %v586
      %629 = vst.msk [vmem:[%s257 + $0x50] sm:$0xff] %vm294, %v591
      %630 = vst.msk [vmem:[%s257 + $0x58] sm:$0xff] %vm294, %v596
      %631 = vst.msk [vmem:[%s257 + $0x60] sm:$0xff] %vm294, %v601
      %632 = vst.msk [vmem:[%s257 + $0x68] sm:$0xff] %vm294, %v606
      %633 = vst.msk [vmem:[%s257 + $0x70] sm:$0xff] %vm294, %v611
      %634 = vst.msk [vmem:[%s257 + $0x78] sm:$0xff] %vm294, %v616
      %p635 = scmp.lt.s32.totalorder %s15, 1
      %s636 = scalar_select %p635, %s15, 1
      %s637 = smul.addr %s636, 16
      %s638 = smul.addr %s637, 8
      %s639 = scalar_lea.vmem %s4, %s638
      // Predicated region
      $region37: #{aa_kernel_forward.9} parent=35 // pred_check
        %p640 = pneg %p137
      $region38: #{aa_kernel_forward.9} parent=35 // pred_check_branch
        %642 = sbr.rel (%p640) target = $region40
      $region39: #{aa_kernel_forward.9} parent=35 // pred_region
        _
      $region40: #{aa_kernel_forward.9} parent=35 // pred_fallthru
        _
    $region36: #{aa_kernel_forward.9} parent=5 // pred_fallthru
      _
    %p643 = scmp.le.s32.totalorder 2, %s10
    // Predicated region
    $region41: #{aa_kernel_forward.9} parent=5 // pred_check
      %p644 = pneg %p643
    $region42: #{aa_kernel_forward.9} parent=5 // pred_check_branch
      %646 = sbr.rel (%p644) target = $region44
    $region43: #{aa_kernel_forward.9} parent=5 // pred_region
      %s647 = ssub.s32 %s10, 2
      // Predicated region
      $region45: #{aa_kernel_forward.9} parent=43 // pred_check
        %p648 = pneg %p143
      $region46: #{aa_kernel_forward.9} parent=43 // pred_check_branch
        %650 = sbr.rel (%p648) target = $region48
      $region47: #{aa_kernel_forward.9} parent=43 // pred_region
        %p651 = scmp.lt.s32.totalorder %s16, 1
        %s652 = scalar_select %p651, %s16, 1
        %s653 = smul.addr %s652, 16
        %s654 = smul.addr %s653, 8
        %s655 = scalar_lea.vmem %s4, %s654
      $region48: #{aa_kernel_forward.9} parent=43 // pred_fallthru
        _
    $region44: #{aa_kernel_forward.9} parent=5 // pred_fallthru
      _
  $region6: #{aa_kernel_forward.9} parent=0 // loop_footer
    %s14 = sadd.s32 1, %s10
  $region7: #{aa_kernel_forward.9} parent=0 // loop_footer_branch
    %9 = sbr.rel target = $region3
  $region8: #{aa_kernel_forward.9} parent=0 // loop_exit
    _

// kernel: aa_kernel_forward.11
$region0: #{aa_kernel_forward.11}
  #allocation0 [shape = 'u32[]', space=smem, size = 0x4, offset = 0x4, fixed_abs, tag = 'smem constant byte address 0x4 - core index']
  #allocation1 [shape = 'u32[144,128]{1,0:T(1,128)}', space=vmem, size = 0x12000, scoped, tag = 'internal scratch']
  %s0 = inlined_call_operand.vmem [shape: f32[2,32,8], index: 0, kind: input, shape index: {}]
  %s1 = inlined_call_operand.vmem [shape: f32[2,32,8], index: 1, kind: input, shape index: {}]
  %s2 = inlined_call_operand.vmem [shape: f32[2,256,8], index: 2, kind: input, shape index: {}]
  %s3 = inlined_call_operand.vmem [shape: f32[2,256,8], index: 3, kind: input, shape index: {}]
  %s4 = inlined_call_operand.vmem [shape: f32[2,256,8], index: 4, kind: output, shape index: {}]
  %s5 = sld [smem:[#allocation0]]
  $region49: #{aa_kernel_forward.11} parent=0
    _
  %s7 = ssub.s32 1, %s5
  %s8 = scalar_select 0, %s7, %s5
  loop: start=0, step=1, limit=4
  $region2: #{aa_kernel_forward.11} parent=0 // loop_pre_header
    _
  $region3: #{aa_kernel_forward.11} parent=0 // loop_header
    %s10 = sphi 0, %s14
    %p11 = scmp.ge.s32.totalorder %s10, 4
    %s20 = sphi 0, %s22
    %s23 = sphi 0, %s20
    %s24 = sphi 0, %s23
    %s40 = sphi 0, %s24
    %s46 = sphi 0, %s48
    %s49 = sphi 0, %s46
    %s50 = sphi 0, %s49
    %s66 = sphi 0, %s50
    %s72 = sphi 0, %s74
    %s75 = sphi 0, %s72
    %s76 = sphi 0, %s75
    %s92 = sphi 0, %s76
    %s98 = sphi 0, %s100
    %s101 = sphi 0, %s98
    %s102 = sphi 0, %s101
    %s118 = sphi 0, %s102
    %s124 = sphi 0, %s126
    %s127 = sphi 0, %s124
    %s128 = sphi 0, %s127
    %s144 = sphi 0, %s128
  $region4: #{aa_kernel_forward.11} parent=0 // loop_header_branch
    %13 = sbr.rel (%p11) target = $region8
  $region5: #{aa_kernel_forward.11} parent=0 // loop_body
    %s15 = ssub.s32 %s10, 1
    %s16 = ssub.s32 %s10, 2
    %s17 = sadd.s32 %s10, 1
    %s18 = ssub.s32 %s10, %s17
    %p19 = scmp.eq.s32.totalorder %s18, 0
    %s21 = sadd.s32 %s20, 1
    %s22 = scalar_select %p19, %s20, %s21
    %p25 = pneg %p19
    %p26 = scmp.eq.s32.totalorder %s10, 1
    %p27 = por %p25, %p26
    %p28 = scmp.ne.s32.totalorder %s20, %s23
    %p29 = scmp.eq.s32.totalorder %s10, 0
    %p30 = por %p28, %p29
    %p31 = scmp.ne.s32.totalorder %s20, %s23
    %p32 = scmp.eq.s32.totalorder %s15, 1
    %p33 = por %p31, %p32
    %p34 = scmp.ne.s32.totalorder %s23, %s24
    %p35 = scmp.eq.s32.totalorder %s15, 0
    %p36 = por %p34, %p35
    %p37 = scmp.ne.s32.totalorder %s23, %s24
    %p38 = scmp.eq.s32.totalorder %s16, 1
    %p39 = por %p37, %p38
    %p41 = scmp.ne.s32.totalorder %s24, %s40
    %p42 = scmp.eq.s32.totalorder %s16, 0
    %p43 = por %p41, %p42
    %s44 = ssub.s32 %s10, %s17
    %p45 = scmp.eq.s32.totalorder %s44, 0
    %s47 = sadd.s32 %s46, 1
    %s48 = scalar_select %p45, %s46, %s47
    %p51 = pneg %p45
    %p52 = scmp.eq.s32.totalorder %s10, 1
    %p53 = por %p51, %p52
    %p54 = scmp.ne.s32.totalorder %s46, %s49
    %p55 = scmp.eq.s32.totalorder %s10, 0
    %p56 = por %p54, %p55
    %p57 = scmp.ne.s32.totalorder %s46, %s49
    %p58 = scmp.eq.s32.totalorder %s15, 1
    %p59 = por %p57, %p58
    %p60 = scmp.ne.s32.totalorder %s49, %s50
    %p61 = scmp.eq.s32.totalorder %s15, 0
    %p62 = por %p60, %p61
    %p63 = scmp.ne.s32.totalorder %s49, %s50
    %p64 = scmp.eq.s32.totalorder %s16, 1
    %p65 = por %p63, %p64
    %p67 = scmp.ne.s32.totalorder %s50, %s66
    %p68 = scmp.eq.s32.totalorder %s16, 0
    %p69 = por %p67, %p68
    %s70 = ssub.s32 %s10, %s17
    %p71 = scmp.eq.s32.totalorder %s70, 0
    %s73 = sadd.s32 %s72, 1
    %s74 = scalar_select %p71, %s72, %s73
    %p77 = pneg %p71
    %p78 = scmp.eq.s32.totalorder %s10, 1
    %p79 = por %p77, %p78
    %p80 = scmp.ne.s32.totalorder %s72, %s75
    %p81 = scmp.eq.s32.totalorder %s10, 0
    %p82 = por %p80, %p81
    %p83 = scmp.ne.s32.totalorder %s72, %s75
    %p84 = scmp.eq.s32.totalorder %s15, 1
    %p85 = por %p83, %p84
    %p86 = scmp.ne.s32.totalorder %s75, %s76
    %p87 = scmp.eq.s32.totalorder %s15, 0
    %p88 = por %p86, %p87
    %p89 = scmp.ne.s32.totalorder %s75, %s76
    %p90 = scmp.eq.s32.totalorder %s16, 1
    %p91 = por %p89, %p90
    %p93 = scmp.ne.s32.totalorder %s76, %s92
    %p94 = scmp.eq.s32.totalorder %s16, 0
    %p95 = por %p93, %p94
    %s96 = ssub.s32 %s10, %s17
    %p97 = scmp.eq.s32.totalorder %s96, 0
    %s99 = sadd.s32 %s98, 1
    %s100 = scalar_select %p97, %s98, %s99
    %p103 = pneg %p97
    %p104 = scmp.eq.s32.totalorder %s10, 1
    %p105 = por %p103, %p104
    %p106 = scmp.ne.s32.totalorder %s98, %s101
    %p107 = scmp.eq.s32.totalorder %s10, 0
    %p108 = por %p106, %p107
    %p109 = scmp.ne.s32.totalorder %s98, %s101
    %p110 = scmp.eq.s32.totalorder %s15, 1
    %p111 = por %p109, %p110
    %p112 = scmp.ne.s32.totalorder %s101, %s102
    %p113 = scmp.eq.s32.totalorder %s15, 0
    %p114 = por %p112, %p113
    %p115 = scmp.ne.s32.totalorder %s101, %s102
    %p116 = scmp.eq.s32.totalorder %s16, 1
    %p117 = por %p115, %p116
    %p119 = scmp.ne.s32.totalorder %s102, %s118
    %p120 = scmp.eq.s32.totalorder %s16, 0
    %p121 = por %p119, %p120
    %s122 = ssub.s32 %s10, %s17
    %p123 = scmp.eq.s32.totalorder %s122, 0
    %s125 = sadd.s32 %s124, 1
    %s126 = scalar_select %p123, %s124, %s125
    %p129 = pneg %p123
    %p130 = scmp.eq.s32.totalorder %s10, 1
    %p131 = por %p129, %p130
    %p132 = scmp.ne.s32.totalorder %s124, %s127
    %p133 = scmp.eq.s32.totalorder %s10, 0
    %p134 = por %p132, %p133
    %p135 = scmp.ne.s32.totalorder %s124, %s127
    %p136 = scmp.eq.s32.totalorder %s15, 1
    %p137 = por %p135, %p136
    %p138 = scmp.ne.s32.totalorder %s127, %s128
    %p139 = scmp.eq.s32.totalorder %s15, 0
    %p140 = por %p138, %p139
    %p141 = scmp.ne.s32.totalorder %s127, %s128
    %p142 = scmp.eq.s32.totalorder %s16, 1
    %p143 = por %p141, %p142
    %p145 = scmp.ne.s32.totalorder %s128, %s144
    %p146 = scmp.eq.s32.totalorder %s16, 0
    %p147 = por %p145, %p146
    %p148 = scmp.le.s32.totalorder 1, %s10
    %p149 = scmp.lt.s32.totalorder %s10, 3
    %p150 = pnand %p148, %p149
    %p151 = pneg %p150
    // Predicated region
    $region9: #{aa_kernel_forward.11} parent=5 // pred_check
      _
    $region10: #{aa_kernel_forward.11} parent=5 // pred_check_branch
      %153 = sbr.rel (%p150) target = $region12
    $region11: #{aa_kernel_forward.11} parent=5 // pred_region
      %s154 = ssub.s32 %s10, 1
    $region12: #{aa_kernel_forward.11} parent=5 // pred_fallthru
      _
    %p155 = scmp.lt.s32.totalorder %s10, 2
    // Predicated region
    $region13: #{aa_kernel_forward.11} parent=5 // pred_check
      %p156 = pneg %p155
    $region14: #{aa_kernel_forward.11} parent=5 // pred_check_branch
      %158 = sbr.rel (%p156) target = $region16
    $region15: #{aa_kernel_forward.11} parent=5 // pred_region
      // Predicated region
      $region17: #{aa_kernel_forward.11} parent=15 // pred_check
        %p159 = pneg %p30
      $region18: #{aa_kernel_forward.11} parent=15 // pred_check_branch
        %161 = sbr.rel (%p159) target = $region20
      $region19: #{aa_kernel_forward.11} parent=15 // pred_region
        %p162 = scmp.lt.s32.totalorder %s10, 1
        %s163 = scalar_select %p162, %s10, 1
        %s164 = smul.addr %s163, 4
        %s165 = smul.addr %s164, 8
        %s166 = scalar_lea.vmem %s0, %s165
      $region20: #{aa_kernel_forward.11} parent=15 // pred_fallthru
        _
      // Predicated region
      $region21: #{aa_kernel_forward.11} parent=15 // pred_check
        %p167 = pneg %p56
      $region22: #{aa_kernel_forward.11} parent=15 // pred_check_branch
        %169 = sbr.rel (%p167) target = $region24
      $region23: #{aa_kernel_forward.11} parent=15 // pred_region
        %p170 = scmp.lt.s32.totalorder %s10, 1
        %s171 = scalar_select %p170, %s10, 1
        %s172 = smul.addr %s171, 4
        %s173 = smul.addr %s172, 8
        %s174 = scalar_lea.vmem %s1, %s173
      $region24: #{aa_kernel_forward.11} parent=15 // pred_fallthru
        _
      // Predicated region
      $region25: #{aa_kernel_forward.11} parent=15 // pred_check
        %p175 = pneg %p82
      $region26: #{aa_kernel_forward.11} parent=15 // pred_check_branch
        %177 = sbr.rel (%p175) target = $region28
      $region27: #{aa_kernel_forward.11} parent=15 // pred_region
        %p178 = scmp.lt.s32.totalorder %s10, 1
        %s179 = scalar_select %p178, %s10, 1
        %s180 = smul.addr %s179, 32
        %s181 = smul.addr %s180, 8
        %s182 = scalar_lea.vmem %s2, %s181
      $region28: #{aa_kernel_forward.11} parent=15 // pred_fallthru
        _
      // Predicated region
      $region29: #{aa_kernel_forward.11} parent=15 // pred_check
        %p183 = pneg %p108
      $region30: #{aa_kernel_forward.11} parent=15 // pred_check_branch
        %185 = sbr.rel (%p183) target = $region32
      $region31: #{aa_kernel_forward.11} parent=15 // pred_region
        %p186 = scmp.lt.s32.totalorder %s10, 1
        %s187 = scalar_select %p186, %s10, 1
        %s188 = smul.addr %s187, 32
        %s189 = smul.addr %s188, 8
        %s190 = scalar_lea.vmem %s3, %s189
      $region32: #{aa_kernel_forward.11} parent=15 // pred_fallthru
        _
    $region16: #{aa_kernel_forward.11} parent=5 // pred_fallthru
      _
    %p191 = scmp.le.s32.totalorder 1, %s10
    %p192 = scmp.lt.s32.totalorder %s10, 3
    %p193 = pnand %p191, %p192
    %p194 = pneg %p193
    // Predicated region
    $region33: #{aa_kernel_forward.11} parent=5 // pred_check
      _
    $region34: #{aa_kernel_forward.11} parent=5 // pred_check_branch
      %196 = sbr.rel (%p193) target = $region36
    $region35: #{aa_kernel_forward.11} parent=5 // pred_region
      %s197 = ssub.s32 %s10, 1
      %p198 = scmp.lt.s32.totalorder %s15, 1
      %s199 = scalar_select %p198, %s15, 1
      %s200 = smul.addr %s199, 4
      %s201 = smul.addr %s200, 8
      %s202 = scalar_lea.vmem %s0, %s201
      %p203 = pneg %p36
      %p204 = pneg %p33
      %p205 = scmp.lt.s32.totalorder %s15, 1
      %s206 = scalar_select %p205, %s15, 1
      %s207 = smul.addr %s206, 4
      %s208 = smul.addr %s207, 8
      %s209 = scalar_lea.vmem %s1, %s208
      %p210 = pneg %p62
      %p211 = pneg %p59
      %p212 = scmp.lt.s32.totalorder %s15, 1
      %s213 = scalar_select %p212, %s15, 1
      %s214 = smul.addr %s213, 32
      %s215 = smul.addr %s214, 8
      %s216 = scalar_lea.vmem %s2, %s215
      %p217 = pneg %p88
      %p218 = pneg %p85
      %p219 = scmp.lt.s32.totalorder %s15, 1
      %s220 = scalar_select %p219, %s15, 1
      %s221 = smul.addr %s220, 32
      %s222 = smul.addr %s221, 8
      %s223 = scalar_lea.vmem %s3, %s222
      %p224 = pneg %p114
      %p225 = pneg %p111
      %p226 = pneg %p140
      %p227 = pneg %p137
      %p228 = scmp.lt.s32.totalorder %s15, 1
      %s229 = scalar_select %p228, %s15, 1
      %s230 = smul.addr %s229, 32
      %s231 = smul.addr %s230, 8
      %s232 = scalar_lea.vmem %s4, %s231
      %p233 = scmp.lt.s32.totalorder %s15, 1
      %s234 = scalar_select %p233, %s15, 1
      %s235 = smul.addr %s234, 4
      %s236 = smul.addr %s235, 8
      %s237 = scalar_lea.vmem %s0, %s236
      %p238 = scmp.lt.s32.totalorder %s15, 1
      %s239 = scalar_select %p238, %s15, 1
      %s240 = smul.addr %s239, 4
      %s241 = smul.addr %s240, 8
      %s242 = scalar_lea.vmem %s1, %s241
      %p243 = scmp.lt.s32.totalorder %s15, 1
      %s244 = scalar_select %p243, %s15, 1
      %s245 = smul.addr %s244, 32
      %s246 = smul.addr %s245, 8
      %s247 = scalar_lea.vmem %s2, %s246
      %p248 = scmp.lt.s32.totalorder %s15, 1
      %s249 = scalar_select %p248, %s15, 1
      %s250 = smul.addr %s249, 32
      %s251 = smul.addr %s250, 8
      %s252 = scalar_lea.vmem %s3, %s251
      %p253 = scmp.lt.s32.totalorder %s15, 1
      %s254 = scalar_select %p253, %s15, 1
      %s255 = smul.addr %s254, 32
      %s256 = smul.addr %s255, 8
      %s257 = scalar_lea.vmem %s4, %s256
      %v258 = vld [vmem:[%s237] sm:$0xff]
      %v259 = vld [vmem:[%s237 + $0x8] sm:$0xff]
      %v260 = vld [vmem:[%s237 + $0x10] sm:$0xff]
      %v261 = vld [vmem:[%s237 + $0x18] sm:$0xff]
      %v262 = vld [vmem:[%s242] sm:$0xff]
      %v263 = vld [vmem:[%s242 + $0x8] sm:$0xff]
      %v264 = vld [vmem:[%s242 + $0x10] sm:$0xff]
      %v265 = vld [vmem:[%s242 + $0x18] sm:$0xff]
      %266 = vxpose.xlu0.b32.start [1/16] %v258, 128
      %267 = vxpose.xlu0.b32.cont [2/16] %v259, 128
      %268 = vxpose.xlu0.b32.cont [3/16] %v260, 128
      %269 = vxpose.xlu0.b32.cont [4/16] %v261, 128
      %270 = vxpose.xlu0.b32.cont [5/16] 0.0, 128
      %271 = vxpose.xlu0.b32.cont [6/16] 0.0, 128
      %272 = vxpose.xlu0.b32.cont [7/16] 0.0, 128
      %273 = vxpose.xlu0.b32.cont [8/16] 0.0, 128
      %274 = vxpose.xlu0.b32.cont [9/16] 0.0, 128
      %275 = vxpose.xlu0.b32.cont [10/16] 0.0, 128
      %276 = vxpose.xlu0.b32.cont [11/16] 0.0, 128
      %277 = vxpose.xlu0.b32.cont [12/16] 0.0, 128
      %278 = vxpose.xlu0.b32.cont [13/16] 0.0, 128
      %279 = vxpose.xlu0.b32.cont [14/16] 0.0, 128
      %280 = vxpose.xlu0.b32.cont [15/16] 0.0, 128
      %281 = vxpose.xlu0.b32.end [16/16] 0.0, 128
      %v282 = vpop.trf.xlu0
      %v283 = vpop.trf.xlu0
      %v284 = vpop.trf.xlu0
      %v285 = vpop.trf.xlu0
      %v286 = vpop.trf.xlu0
      %v287 = vpop.trf.xlu0
      %v288 = vpop.trf.xlu0
      %v289 = vpop.trf.xlu0
      %v290 = vpop.trf.xlu0
      %v291 = vpop.trf.xlu0
      %v292 = vpop.trf.xlu0
      %v293 = vpop.trf.xlu0
      %v294 = vpop.trf.xlu0
      %v295 = vpop.trf.xlu0
      %v296 = vpop.trf.xlu0
      %v297 = vpop.trf.xlu0
      %vm298 = vcmask 261120
      %v300 = vsel %vm298, %v282, 0
      %302 = vmatprep.subr.mxu0 0.0
      %303 = vmatpush1.msra.mxu0 0.0
      %304 = vmatprep.subr.mxu0 0.0
      %305 = vmatpush1.msra.mxu0 0.0
      %306 = vmatprep.subr.mxu0 0.0
      %307 = vmatpush1.msra.mxu0 0.0
      %308 = vmatprep.subr.mxu0 0.0
      %309 = vmatpush1.msra.mxu0 0.0
      %310 = vmatprep.subr.mxu0 0.0
      %311 = vmatpush1.msra.mxu0 0.0
      %312 = vmatprep.subr.mxu0 0.0
      %313 = vmatpush1.msra.mxu0 0.0
      %314 = vmatprep.subr.mxu0 0.0
      %315 = vmatpush1.msra.mxu0 0.0
      %316 = vmatprep.subr.mxu0 0.0
      %317 = vmatpush1.msra.mxu0 0.0
      %318 = vmatprep.subr.mxu0 0.0
      %319 = vmatpush1.msra.mxu0 0.0
      %320 = vmatprep.subr.mxu0 0.0
      %321 = vmatpush1.msra.mxu0 0.0
      %322 = vmatprep.subr.mxu0 0.0
      %323 = vmatpush1.msra.mxu0 0.0
      %324 = vmatprep.subr.mxu0 0.0
      %325 = vmatpush1.msra.mxu0 0.0
      %326 = vmatprep.subr.mxu0 0.0
      %327 = vmatpush1.msra.mxu0 %v265
      %328 = vmatprep.subr.mxu0 0.0
      %329 = vmatpush1.msra.mxu0 %v264
      %330 = vmatprep.subr.mxu0 0.0
      %331 = vmatpush1.msra.mxu0 %v263
      %332 = vmatprep.subr.mxu0 0.0
      %333 = vmatpush1.msra.mxu0 %v262
      %334 = vmatprep.subr.mxu0 0.0
      %335 = vmatpush2.msra.mxu0 0.0
      %336 = vmatprep.subr.mxu0 0.0
      %337 = vmatpush2.msra.mxu0 0.0
      %338 = vmatprep.subr.mxu0 0.0
      %339 = vmatpush2.msra.mxu0 0.0
      %340 = vmatprep.subr.mxu0 0.0
      %341 = vmatpush2.msra.mxu0 0.0
      %342 = vmatprep.subr.mxu0 0.0
      %343 = vmatpush2.msra.mxu0 0.0
      %344 = vmatprep.subr.mxu0 0.0
      %345 = vmatpush2.msra.mxu0 0.0
      %346 = vmatprep.subr.mxu0 0.0
      %347 = vmatpush2.msra.mxu0 0.0
      %348 = vmatprep.subr.mxu0 0.0
      %349 = vmatpush2.msra.mxu0 0.0
      %350 = vmatprep.subr.mxu0 0.0
      %351 = vmatpush2.msra.mxu0 0.0
      %352 = vmatprep.subr.mxu0 0.0
      %353 = vmatpush2.msra.mxu0 0.0
      %354 = vmatprep.subr.mxu0 0.0
      %355 = vmatpush2.msra.mxu0 0.0
      %356 = vmatprep.subr.mxu0 0.0
      %357 = vmatpush2.msra.mxu0 0.0
      %358 = vmatprep.subr.mxu0 0.0
      %359 = vmatpush2.msra.mxu0 0.0
      %360 = vmatprep.subr.mxu0 0.0
      %361 = vmatpush2.msra.mxu0 0.0
      %362 = vmatprep.subr.mxu0 0.0
      %363 = vmatpush2.msra.mxu0 0.0
      %364 = vmatprep.subr.mxu0 0.0
      %365 = vmatpush2.msra.mxu0 0.0
      %366 = vmatprep.mubr.f32.mxu0 0.0
      %367 = vmatmul.mubr.f32.gmra.mxu0 %v300
      %v368 = vpop.f32.mrf.mxu0
      %v369 = vadd.f32 0.0, %v368
      %v370 = vpop.f32.mrf.mxu0
      %371 = vdwg.mxu0
      %v372 = vsub.f32 0.0, %v369
      %v373 = vmul.f32 %v372, 1.442695
      %v374 = vpow.pop %v373
      %v375 = vadd.f32 %v374, 1.0
      %v376 = vrcp.pop %v375
      %v377 = vmul.f32 1.0, %v376
      %v378 = vld [vmem:[%s247] sm:$0xff]
      %v379 = vld [vmem:[%s247 + $0x8] sm:$0xff]
      %v380 = vld [vmem:[%s247 + $0x10] sm:$0xff]
      %v381 = vld [vmem:[%s247 + $0x18] sm:$0xff]
      %v382 = vld [vmem:[%s247 + $0x20] sm:$0xff]
      %v383 = vld [vmem:[%s247 + $0x28] sm:$0xff]
      %v384 = vld [vmem:[%s247 + $0x30] sm:$0xff]
      %v385 = vld [vmem:[%s247 + $0x38] sm:$0xff]
      %v386 = vld [vmem:[%s247 + $0x40] sm:$0xff]
      %v387 = vld [vmem:[%s247 + $0x48] sm:$0xff]
      %v388 = vld [vmem:[%s247 + $0x50] sm:$0xff]
      %v389 = vld [vmem:[%s247 + $0x58] sm:$0xff]
      %v390 = vld [vmem:[%s247 + $0x60] sm:$0xff]
      %v391 = vld [vmem:[%s247 + $0x68] sm:$0xff]
      %v392 = vld [vmem:[%s247 + $0x70] sm:$0xff]
      %v393 = vld [vmem:[%s247 + $0x78] sm:$0xff]
      %v394 = vld [vmem:[%s247 + $0x80] sm:$0xff]
      %v395 = vld [vmem:[%s247 + $0x88] sm:$0xff]
      %v396 = vld [vmem:[%s247 + $0x90] sm:$0xff]
      %v397 = vld [vmem:[%s247 + $0x98] sm:$0xff]
      %v398 = vld [vmem:[%s247 + $0xa0] sm:$0xff]
      %v399 = vld [vmem:[%s247 + $0xa8] sm:$0xff]
      %v400 = vld [vmem:[%s247 + $0xb0] sm:$0xff]
      %v401 = vld [vmem:[%s247 + $0xb8] sm:$0xff]
      %v402 = vld [vmem:[%s247 + $0xc0] sm:$0xff]
      %v403 = vld [vmem:[%s247 + $0xc8] sm:$0xff]
      %v404 = vld [vmem:[%s247 + $0xd0] sm:$0xff]
      %v405 = vld [vmem:[%s247 + $0xd8] sm:$0xff]
      %v406 = vld [vmem:[%s247 + $0xe0] sm:$0xff]
      %v407 = vld [vmem:[%s247 + $0xe8] sm:$0xff]
      %v408 = vld [vmem:[%s247 + $0xf0] sm:$0xff]
      %v409 = vld [vmem:[%s247 + $0xf8] sm:$0xff]
      %v410 = vld [vmem:[%s252] sm:$0xff]
      %v411 = vld [vmem:[%s252 + $0x8] sm:$0xff]
      %v412 = vld [vmem:[%s252 + $0x10] sm:$0xff]
      %v413 = vld [vmem:[%s252 + $0x18] sm:$0xff]
      %v414 = vld [vmem:[%s252 + $0x20] sm:$0xff]
      %v415 = vld [vmem:[%s252 + $0x28] sm:$0xff]
      %v416 = vld [vmem:[%s252 + $0x30] sm:$0xff]
      %v417 = vld [vmem:[%s252 + $0x38] sm:$0xff]
      %v418 = vld [vmem:[%s252 + $0x40] sm:$0xff]
      %v419 = vld [vmem:[%s252 + $0x48] sm:$0xff]
      %v420 = vld [vmem:[%s252 + $0x50] sm:$0xff]
      %v421 = vld [vmem:[%s252 + $0x58] sm:$0xff]
      %v422 = vld [vmem:[%s252 + $0x60] sm:$0xff]
      %v423 = vld [vmem:[%s252 + $0x68] sm:$0xff]
      %v424 = vld [vmem:[%s252 + $0x70] sm:$0xff]
      %v425 = vld [vmem:[%s252 + $0x78] sm:$0xff]
      %v426 = vld [vmem:[%s252 + $0x80] sm:$0xff]
      %v427 = vld [vmem:[%s252 + $0x88] sm:$0xff]
      %v428 = vld [vmem:[%s252 + $0x90] sm:$0xff]
      %v429 = vld [vmem:[%s252 + $0x98] sm:$0xff]
      %v430 = vld [vmem:[%s252 + $0xa0] sm:$0xff]
      %v431 = vld [vmem:[%s252 + $0xa8] sm:$0xff]
      %v432 = vld [vmem:[%s252 + $0xb0] sm:$0xff]
      %v433 = vld [vmem:[%s252 + $0xb8] sm:$0xff]
      %v434 = vld [vmem:[%s252 + $0xc0] sm:$0xff]
      %v435 = vld [vmem:[%s252 + $0xc8] sm:$0xff]
      %v436 = vld [vmem:[%s252 + $0xd0] sm:$0xff]
      %v437 = vld [vmem:[%s252 + $0xd8] sm:$0xff]
      %v438 = vld [vmem:[%s252 + $0xe0] sm:$0xff]
      %v439 = vld [vmem:[%s252 + $0xe8] sm:$0xff]
      %v440 = vld [vmem:[%s252 + $0xf0] sm:$0xff]
      %v441 = vld [vmem:[%s252 + $0xf8] sm:$0xff]
      %vm442 = vcmask 64512
      %v444 = vsel %vm442, %v378, 0
      %v447 = vsel %vm442, %v379, 0
      %v450 = vsel %vm442, %v380, 0
      %v453 = vsel %vm442, %v381, 0
      %v456 = vsel %vm442, %v382, 0
      %v459 = vsel %vm442, %v383, 0
      %v462 = vsel %vm442, %v384, 0
      %v465 = vsel %vm442, %v385, 0
      %v468 = vsel %vm442, %v386, 0
      %v471 = vsel %vm442, %v387, 0
      %v474 = vsel %vm442, %v388, 0
      %v477 = vsel %vm442, %v389, 0
      %v480 = vsel %vm442, %v390, 0
      %v483 = vsel %vm442, %v391, 0
      %v486 = vsel %vm442, %v392, 0
      %v489 = vsel %vm442, %v393, 0
      %v492 = vsel %vm442, %v394, 0
      %v495 = vsel %vm442, %v395, 0
      %v498 = vsel %vm442, %v396, 0
      %v501 = vsel %vm442, %v397, 0
      %v504 = vsel %vm442, %v398, 0
      %v507 = vsel %vm442, %v399, 0
      %v510 = vsel %vm442, %v400, 0
      %v513 = vsel %vm442, %v401, 0
      %v516 = vsel %vm442, %v402, 0
      %v519 = vsel %vm442, %v403, 0
      %v522 = vsel %vm442, %v404, 0
      %v525 = vsel %vm442, %v405, 0
      %v528 = vsel %vm442, %v406, 0
      %v531 = vsel %vm442, %v407, 0
      %v534 = vsel %vm442, %v408, 0
      %v537 = vsel %vm442, %v409, 0
      %v540 = vsel %vm442, %v377, 0
      %542 = vmatprep.subr.mxu0 0.0
      %543 = vmatpush1.xpose.msra.mxu0 0.0
      %544 = vmatprep.subr.mxu0 0.0
      %545 = vmatpush1.xpose.msra.mxu0 0.0
      %546 = vmatprep.subr.mxu0 0.0
      %547 = vmatpush1.xpose.msra.mxu0 0.0
      %548 = vmatprep.subr.mxu0 0.0
      %549 = vmatpush1.xpose.msra.mxu0 0.0
      %550 = vmatprep.subr.mxu0 0.0
      %551 = vmatpush1.xpose.msra.mxu0 0.0
      %552 = vmatprep.subr.mxu0 0.0
      %553 = vmatpush1.xpose.msra.mxu0 0.0
      %554 = vmatprep.subr.mxu0 0.0
      %555 = vmatpush1.xpose.msra.mxu0 0.0
      %556 = vmatprep.subr.mxu0 0.0
      %557 = vmatpush1.xpose.msra.mxu0 0.0
      %558 = vmatprep.subr.mxu0 0.0
      %559 = vmatpush1.xpose.msra.mxu0 0.0
      %560 = vmatprep.subr.mxu0 0.0
      %561 = vmatpush1.xpose.msra.mxu0 0.0
      %562 = vmatprep.subr.mxu0 0.0
      %563 = vmatpush1.xpose.msra.mxu0 0.0
      %564 = vmatprep.subr.mxu0 0.0
      %565 = vmatpush1.xpose.msra.mxu0 0.0
      %566 = vmatprep.subr.mxu0 0.0
      %567 = vmatpush1.xpose.msra.mxu0 0.0
      %568 = vmatprep.subr.mxu0 0.0
      %569 = vmatpush1.xpose.msra.mxu0 0.0
      %570 = vmatprep.subr.mxu0 0.0
      %571 = vmatpush1.xpose.msra.mxu0 0.0
      %572 = vmatprep.subr.mxu0 0.0
      %573 = vmatpush1.xpose.msra.mxu0 %v540
      %574 = vmatprep.subr.mxu0 0.0
      %575 = vmatpush2.xpose.msra.mxu0 0.0
      %576 = vmatprep.subr.mxu0 0.0
      %577 = vmatpush2.xpose.msra.mxu0 0.0
      %578 = vmatprep.subr.mxu0 0.0
      %579 = vmatpush2.xpose.msra.mxu0 0.0
      %580 = vmatprep.subr.mxu0 0.0
      %581 = vmatpush2.xpose.msra.mxu0 0.0
      %582 = vmatprep.subr.mxu0 0.0
      %583 = vmatpush2.xpose.msra.mxu0 0.0
      %584 = vmatprep.subr.mxu0 0.0
      %585 = vmatpush2.xpose.msra.mxu0 0.0
      %586 = vmatprep.subr.mxu0 0.0
      %587 = vmatpush2.xpose.msra.mxu0 0.0
      %588 = vmatprep.subr.mxu0 0.0
      %589 = vmatpush2.xpose.msra.mxu0 0.0
      %590 = vmatprep.subr.mxu0 0.0
      %591 = vmatpush2.xpose.msra.mxu0 0.0
      %592 = vmatprep.subr.mxu0 0.0
      %593 = vmatpush2.xpose.msra.mxu0 0.0
      %594 = vmatprep.subr.mxu0 0.0
      %595 = vmatpush2.xpose.msra.mxu0 0.0
      %596 = vmatprep.subr.mxu0 0.0
      %597 = vmatpush2.xpose.msra.mxu0 0.0
      %598 = vmatprep.subr.mxu0 0.0
      %599 = vmatpush2.xpose.msra.mxu0 0.0
      %600 = vmatprep.subr.mxu0 0.0
      %601 = vmatpush2.xpose.msra.mxu0 0.0
      %602 = vmatprep.subr.mxu0 0.0
      %603 = vmatpush2.xpose.msra.mxu0 0.0
      %604 = vmatprep.subr.mxu0 0.0
      %605 = vmatpush2.xpose.msra.mxu0 0.0
      %606 = vmatprep.mubr.f32.mxu0 0.0
      %607 = vmatmul.mubr.f32.gmra.mxu0 %v444
      %v608 = vpop.f32.mrf.mxu0
      %v609 = vadd.f32 %v410, %v608
      %v610 = vpop.f32.mrf.mxu0
      %611 = vmatprep.mubr.f32.mxu0 0.0
      %612 = vmatmul.mubr.f32.gmra.mxu0 %v447
      %v613 = vpop.f32.mrf.mxu0
      %v614 = vadd.f32 %v411, %v613
      %v615 = vpop.f32.mrf.mxu0
      %616 = vmatprep.mubr.f32.mxu0 0.0
      %617 = vmatmul.mubr.f32.gmra.mxu0 %v450
      %v618 = vpop.f32.mrf.mxu0
      %v619 = vadd.f32 %v412, %v618
      %v620 = vpop.f32.mrf.mxu0
      %621 = vmatprep.mubr.f32.mxu0 0.0
      %622 = vmatmul.mubr.f32.gmra.mxu0 %v453
      %v623 = vpop.f32.mrf.mxu0
      %v624 = vadd.f32 %v413, %v623
      %v625 = vpop.f32.mrf.mxu0
      %626 = vmatprep.mubr.f32.mxu0 0.0
      %627 = vmatmul.mubr.f32.gmra.mxu0 %v456
      %v628 = vpop.f32.mrf.mxu0
      %v629 = vadd.f32 %v414, %v628
      %v630 = vpop.f32.mrf.mxu0
      %631 = vmatprep.mubr.f32.mxu0 0.0
      %632 = vmatmul.mubr.f32.gmra.mxu0 %v459
      %v633 = vpop.f32.mrf.mxu0
      %v634 = vadd.f32 %v415, %v633
      %v635 = vpop.f32.mrf.mxu0
      %636 = vmatprep.mubr.f32.mxu0 0.0
      %637 = vmatmul.mubr.f32.gmra.mxu0 %v462
      %v638 = vpop.f32.mrf.mxu0
      %v639 = vadd.f32 %v416, %v638
      %v640 = vpop.f32.mrf.mxu0
      %641 = vmatprep.mubr.f32.mxu0 0.0
      %642 = vmatmul.mubr.f32.gmra.mxu0 %v465
      %v643 = vpop.f32.mrf.mxu0
      %v644 = vadd.f32 %v417, %v643
      %v645 = vpop.f32.mrf.mxu0
      %646 = vmatprep.mubr.f32.mxu0 0.0
      %647 = vmatmul.mubr.f32.gmra.mxu0 %v468
      %v648 = vpop.f32.mrf.mxu0
      %v649 = vadd.f32 %v418, %v648
      %v650 = vpop.f32.mrf.mxu0
      %651 = vmatprep.mubr.f32.mxu0 0.0
      %652 = vmatmul.mubr.f32.gmra.mxu0 %v471
      %v653 = vpop.f32.mrf.mxu0
      %v654 = vadd.f32 %v419, %v653
      %v655 = vpop.f32.mrf.mxu0
      %656 = vmatprep.mubr.f32.mxu0 0.0
      %657 = vmatmul.mubr.f32.gmra.mxu0 %v474
      %v658 = vpop.f32.mrf.mxu0
      %v659 = vadd.f32 %v420, %v658
      %v660 = vpop.f32.mrf.mxu0
      %661 = vmatprep.mubr.f32.mxu0 0.0
      %662 = vmatmul.mubr.f32.gmra.mxu0 %v477
      %v663 = vpop.f32.mrf.mxu0
      %v664 = vadd.f32 %v421, %v663
      %v665 = vpop.f32.mrf.mxu0
      %666 = vmatprep.mubr.f32.mxu0 0.0
      %667 = vmatmul.mubr.f32.gmra.mxu0 %v480
      %v668 = vpop.f32.mrf.mxu0
      %v669 = vadd.f32 %v422, %v668
      %v670 = vpop.f32.mrf.mxu0
      %671 = vmatprep.mubr.f32.mxu0 0.0
      %672 = vmatmul.mubr.f32.gmra.mxu0 %v483
      %v673 = vpop.f32.mrf.mxu0
      %v674 = vadd.f32 %v423, %v673
      %v675 = vpop.f32.mrf.mxu0
      %676 = vmatprep.mubr.f32.mxu0 0.0
      %677 = vmatmul.mubr.f32.gmra.mxu0 %v486
      %v678 = vpop.f32.mrf.mxu0
      %v679 = vadd.f32 %v424, %v678
      %v680 = vpop.f32.mrf.mxu0
      %681 = vmatprep.mubr.f32.mxu0 0.0
      %682 = vmatmul.mubr.f32.gmra.mxu0 %v489
      %v683 = vpop.f32.mrf.mxu0
      %v684 = vadd.f32 %v425, %v683
      %v685 = vpop.f32.mrf.mxu0
      %686 = vmatprep.mubr.f32.mxu0 0.0
      %687 = vmatmul.mubr.f32.gmra.mxu0 %v492
      %v688 = vpop.f32.mrf.mxu0
      %v689 = vadd.f32 %v426, %v688
      %v690 = vpop.f32.mrf.mxu0
      %691 = vmatprep.mubr.f32.mxu0 0.0
      %692 = vmatmul.mubr.f32.gmra.mxu0 %v495
      %v693 = vpop.f32.mrf.mxu0
      %v694 = vadd.f32 %v427, %v693
      %v695 = vpop.f32.mrf.mxu0
      %696 = vmatprep.mubr.f32.mxu0 0.0
      %697 = vmatmul.mubr.f32.gmra.mxu0 %v498
      %v698 = vpop.f32.mrf.mxu0
      %v699 = vadd.f32 %v428, %v698
      %v700 = vpop.f32.mrf.mxu0
      %701 = vmatprep.mubr.f32.mxu0 0.0
      %702 = vmatmul.mubr.f32.gmra.mxu0 %v501
      %v703 = vpop.f32.mrf.mxu0
      %v704 = vadd.f32 %v429, %v703
      %v705 = vpop.f32.mrf.mxu0
      %706 = vmatprep.mubr.f32.mxu0 0.0
      %707 = vmatmul.mubr.f32.gmra.mxu0 %v504
      %v708 = vpop.f32.mrf.mxu0
      %v709 = vadd.f32 %v430, %v708
      %v710 = vpop.f32.mrf.mxu0
      %711 = vmatprep.mubr.f32.mxu0 0.0
      %712 = vmatmul.mubr.f32.gmra.mxu0 %v507
      %v713 = vpop.f32.mrf.mxu0
      %v714 = vadd.f32 %v431, %v713
      %v715 = vpop.f32.mrf.mxu0
      %716 = vmatprep.mubr.f32.mxu0 0.0
      %717 = vmatmul.mubr.f32.gmra.mxu0 %v510
      %v718 = vpop.f32.mrf.mxu0
      %v719 = vadd.f32 %v432, %v718
      %v720 = vpop.f32.mrf.mxu0
      %721 = vmatprep.mubr.f32.mxu0 0.0
      %722 = vmatmul.mubr.f32.gmra.mxu0 %v513
      %v723 = vpop.f32.mrf.mxu0
      %v724 = vadd.f32 %v433, %v723
      %v725 = vpop.f32.mrf.mxu0
      %726 = vmatprep.mubr.f32.mxu0 0.0
      %727 = vmatmul.mubr.f32.gmra.mxu0 %v516
      %v728 = vpop.f32.mrf.mxu0
      %v729 = vadd.f32 %v434, %v728
      %v730 = vpop.f32.mrf.mxu0
      %731 = vmatprep.mubr.f32.mxu0 0.0
      %732 = vmatmul.mubr.f32.gmra.mxu0 %v519
      %v733 = vpop.f32.mrf.mxu0
      %v734 = vadd.f32 %v435, %v733
      %v735 = vpop.f32.mrf.mxu0
      %736 = vmatprep.mubr.f32.mxu0 0.0
      %737 = vmatmul.mubr.f32.gmra.mxu0 %v522
      %v738 = vpop.f32.mrf.mxu0
      %v739 = vadd.f32 %v436, %v738
      %v740 = vpop.f32.mrf.mxu0
      %741 = vmatprep.mubr.f32.mxu0 0.0
      %742 = vmatmul.mubr.f32.gmra.mxu0 %v525
      %v743 = vpop.f32.mrf.mxu0
      %v744 = vadd.f32 %v437, %v743
      %v745 = vpop.f32.mrf.mxu0
      %746 = vmatprep.mubr.f32.mxu0 0.0
      %747 = vmatmul.mubr.f32.gmra.mxu0 %v528
      %v748 = vpop.f32.mrf.mxu0
      %v749 = vadd.f32 %v438, %v748
      %v750 = vpop.f32.mrf.mxu0
      %751 = vmatprep.mubr.f32.mxu0 0.0
      %752 = vmatmul.mubr.f32.gmra.mxu0 %v531
      %v753 = vpop.f32.mrf.mxu0
      %v754 = vadd.f32 %v439, %v753
      %v755 = vpop.f32.mrf.mxu0
      %756 = vmatprep.mubr.f32.mxu0 0.0
      %757 = vmatmul.mubr.f32.gmra.mxu0 %v534
      %v758 = vpop.f32.mrf.mxu0
      %v759 = vadd.f32 %v440, %v758
      %v760 = vpop.f32.mrf.mxu0
      %761 = vmatprep.mubr.f32.mxu0 0.0
      %762 = vmatmul.mubr.f32.gmra.mxu0 %v537
      %v763 = vpop.f32.mrf.mxu0
      %v764 = vadd.f32 %v441, %v763
      %v765 = vpop.f32.mrf.mxu0
      %766 = vdwg.mxu0
      %767 = vst.msk [vmem:[%s257] sm:$0xff] %vm442, %v609
      %768 = vst.msk [vmem:[%s257 + $0x8] sm:$0xff] %vm442, %v614
      %769 = vst.msk [vmem:[%s257 + $0x10] sm:$0xff] %vm442, %v619
      %770 = vst.msk [vmem:[%s257 + $0x18] sm:$0xff] %vm442, %v624
      %771 = vst.msk [vmem:[%s257 + $0x20] sm:$0xff] %vm442, %v629
      %772 = vst.msk [vmem:[%s257 + $0x28] sm:$0xff] %vm442, %v634
      %773 = vst.msk [vmem:[%s257 + $0x30] sm:$0xff] %vm442, %v639
      %774 = vst.msk [vmem:[%s257 + $0x38] sm:$0xff] %vm442, %v644
      %775 = vst.msk [vmem:[%s257 + $0x40] sm:$0xff] %vm442, %v649
      %776 = vst.msk [vmem:[%s257 + $0x48] sm:$0xff] %vm442, %v654
      %777 = vst.msk [vmem:[%s257 + $0x50] sm:$0xff] %vm442, %v659
      %778 = vst.msk [vmem:[%s257 + $0x58] sm:$0xff] %vm442, %v664
      %779 = vst.msk [vmem:[%s257 + $0x60] sm:$0xff] %vm442, %v669
      %780 = vst.msk [vmem:[%s257 + $0x68] sm:$0xff] %vm442, %v674
      %781 = vst.msk [vmem:[%s257 + $0x70] sm:$0xff] %vm442, %v679
      %782 = vst.msk [vmem:[%s257 + $0x78] sm:$0xff] %vm442, %v684
      %783 = vst.msk [vmem:[%s257 + $0x80] sm:$0xff] %vm442, %v689
      %784 = vst.msk [vmem:[%s257 + $0x88] sm:$0xff] %vm442, %v694
      %785 = vst.msk [vmem:[%s257 + $0x90] sm:$0xff] %vm442, %v699
      %786 = vst.msk [vmem:[%s257 + $0x98] sm:$0xff] %vm442, %v704
      %787 = vst.msk [vmem:[%s257 + $0xa0] sm:$0xff] %vm442, %v709
      %788 = vst.msk [vmem:[%s257 + $0xa8] sm:$0xff] %vm442, %v714
      %789 = vst.msk [vmem:[%s257 + $0xb0] sm:$0xff] %vm442, %v719
      %790 = vst.msk [vmem:[%s257 + $0xb8] sm:$0xff] %vm442, %v724
      %791 = vst.msk [vmem:[%s257 + $0xc0] sm:$0xff] %vm442, %v729
      %792 = vst.msk [vmem:[%s257 + $0xc8] sm:$0xff] %vm442, %v734
      %793 = vst.msk [vmem:[%s257 + $0xd0] sm:$0xff] %vm442, %v739
      %794 = vst.msk [vmem:[%s257 + $0xd8] sm:$0xff] %vm442, %v744
      %795 = vst.msk [vmem:[%s257 + $0xe0] sm:$0xff] %vm442, %v749
      %796 = vst.msk [vmem:[%s257 + $0xe8] sm:$0xff] %vm442, %v754
      %797 = vst.msk [vmem:[%s257 + $0xf0] sm:$0xff] %vm442, %v759
      %798 = vst.msk [vmem:[%s257 + $0xf8] sm:$0xff] %vm442, %v764
      %p799 = scmp.lt.s32.totalorder %s15, 1
      %s800 = scalar_select %p799, %s15, 1
      %s801 = smul.addr %s800, 32
      %s802 = smul.addr %s801, 8
      %s803 = scalar_lea.vmem %s4, %s802
      // Predicated region
      $region37: #{aa_kernel_forward.11} parent=35 // pred_check
        %p804 = pneg %p137
      $region38: #{aa_kernel_forward.11} parent=35 // pred_check_branch
        %806 = sbr.rel (%p804) target = $region40
      $region39: #{aa_kernel_forward.11} parent=35 // pred_region
        _
      $region40: #{aa_kernel_forward.11} parent=35 // pred_fallthru
        _
    $region36: #{aa_kernel_forward.11} parent=5 // pred_fallthru
      _
    %p807 = scmp.le.s32.totalorder 2, %s10
    // Predicated region
    $region41: #{aa_kernel_forward.11} parent=5 // pred_check
      %p808 = pneg %p807
    $region42: #{aa_kernel_forward.11} parent=5 // pred_check_branch
      %810 = sbr.rel (%p808) target = $region44
    $region43: #{aa_kernel_forward.11} parent=5 // pred_region
      %s811 = ssub.s32 %s10, 2
      // Predicated region
      $region45: #{aa_kernel_forward.11} parent=43 // pred_check
        %p812 = pneg %p143
      $region46: #{aa_kernel_forward.11} parent=43 // pred_check_branch
        %814 = sbr.rel (%p812) target = $region48
      $region47: #{aa_kernel_forward.11} parent=43 // pred_region
        %p815 = scmp.lt.s32.totalorder %s16, 1
        %s816 = scalar_select %p815, %s16, 1
        %s817 = smul.addr %s816, 32
        %s818 = smul.addr %s817, 8
        %s819 = scalar_lea.vmem %s4, %s818
      $region48: #{aa_kernel_forward.11} parent=43 // pred_fallthru
        _
    $region44: #{aa_kernel_forward.11} parent=5 // pred_fallthru
      _
  $region6: #{aa_kernel_forward.11} parent=0 // loop_footer
    %s14 = sadd.s32 1, %s10
  $region7: #{aa_kernel_forward.11} parent=0 // loop_footer_branch
    %9 = sbr.rel target = $region3
  $region8: #{aa_kernel_forward.11} parent=0 // loop_exit
    _

</llo_original>
